<compile_context>
chip_gen: v7x
topology: tpu7x:2x2x1
jax: 0.10.0
libtpu: 0.0.40
codegen_flags: <defaults>
</compile_context>

<pallas_src>
import math
from functools import partial

import jax
import jax.numpy as jnp
from jax import lax
from jax.experimental import pallas as pl
from jax.experimental.pallas import tpu as pltpu


def _mha_body(xq_ref, xk_ref, xv_ref, mask_ref,
              wq_ref, bq_ref, wk_ref, bk_ref, wv_ref, bv_ref,
              wo_ref, bo_ref, o_ref, ctx_ref, *, h, scale):
    """One batch element: fused projections + per-head attention + output proj."""
    f32 = jnp.float32
    bf16 = jnp.bfloat16

    # --- input projections: full d_model-wide matmuls, bf16 operands, f32 acc ---
    q = jnp.dot(xq_ref[0], wq_ref[...], preferred_element_type=f32) + bq_ref[...]
    k = jnp.dot(xk_ref[0], wk_ref[...], preferred_element_type=f32) + bk_ref[...]
    v = jnp.dot(xv_ref[0], wv_ref[...], preferred_element_type=f32) + bv_ref[...]
    q = (q * scale).astype(bf16)        # fold 1/sqrt(d_k) into q once
    k = k.astype(bf16)
    v = v.astype(bf16)

    # --- additive mask bias, built ONCE per batch step (shared across heads) ---
    if mask_ref is not None:
        mbias = jnp.where(mask_ref[0] == 0, -1e9, 0.0).astype(f32)   # (mq, S)
    else:
        mbias = None

    d_model = q.shape[-1]
    d_k = d_model // h

    # --- per-head attention; ctx written into its column slice of the scratch ---
    for hh in range(h):
        sl = slice(hh * d_k, (hh + 1) * d_k)
        s = lax.dot_general(q[:, sl], k[:, sl],
                            dimension_numbers=(((1,), (1,)), ((), ())),
                            preferred_element_type=f32)              # (S, S) f32
        if mbias is not None:
            s = s + mbias
        s = s - jnp.max(s, axis=-1, keepdims=True)                   # stable softmax
        p = jnp.exp(s)
        inv = pl.reciprocal(jnp.sum(p, axis=-1, keepdims=True), approx=True)
        # TODO(synk): nn.Dropout(p_attn) is identity in eval mode; train-mode
        # dropout (and exposing p_attn / self.attention) is not implemented.
        ctx = jnp.dot(p.astype(bf16), v[:, sl], preferred_element_type=f32)
        ctx_ref[:, sl] = ctx * inv       # normalize (S,d_k), not p (S,S)

    # --- ONE deep-K output projection over all heads, + bias ---
    out = jnp.dot(ctx_ref[...].astype(bf16), wo_ref[...],
                  preferred_element_type=f32) + bo_ref[...]
    o_ref[0] = out.astype(o_ref.dtype)


def _make_kernel(shared_x, masked, h, scale):
    """Kernel variant: shared activation ref (self-attention) vs separate q/k/v
    refs, with or without a mask input."""
    def kernel(*refs):
        if shared_x:
            xq = xk = xv = refs[0]
            i = 1
        else:
            xq, xk, xv = refs[0], refs[1], refs[2]
            i = 3
        if masked:
            mref = refs[i]
            i += 1
        else:
            mref = None
        (wq, bq, wk, bk, wv, bv, wo, bo, o_ref, ctx_ref) = refs[i:]
        _mha_body(xq, xk, xv, mref, wq, bq, wk, bk, wv, bv, wo, bo,
                  o_ref, ctx_ref, h=h, scale=scale)
    return kernel


def multi_headed_attention(query, key=None, value=None, *, params, h, mask=None):
    """query/key/value: (B, S, d_model); key/value=None means self-attention
    (the activation is passed to the kernel once).  mask: None or broadcastable
    to (B, S, S), 0 => masked (same mask for all heads, like mask.unsqueeze(1)).
    Weights use the y = x @ w + b convention (w = torch Linear.weight.T).
    Returns (B, S, d_model)."""
    key = query if key is None else key
    value = query if value is None else value

    B, S, d_model = query.shape
    assert d_model % h == 0
    d_k = d_model // h
    scale = 1.0 / math.sqrt(d_k)
    bf16, f32 = jnp.bfloat16, jnp.float32

    # Matmul operands in bf16; biases stay f32 (tiny, added to the f32 acc).
    wq = params["wq"].astype(bf16)
    wk = params["wk"].astype(bf16)
    wv = params["wv"].astype(bf16)
    wo = params["wo"].astype(bf16)
    bq = params["bq"].reshape(1, d_model).astype(f32)
    bk = params["bk"].reshape(1, d_model).astype(f32)
    bv = params["bv"].reshape(1, d_model).astype(f32)
    bo = params["bo"].reshape(1, d_model).astype(f32)

    x_spec = pl.BlockSpec((1, S, d_model), lambda b: (b, 0, 0))
    # Constant index_map -> grid-resident weights (DMA'd from HBM once).
    w_spec = pl.BlockSpec((d_model, d_model), lambda b: (0, 0))
    b_spec = pl.BlockSpec((1, d_model), lambda b: (0, 0))
    out_spec = pl.BlockSpec((1, S, d_model), lambda b: (b, 0, 0))

    shared_x = (key is query) and (value is query)
    if shared_x:
        act_in, act_specs = [query.astype(bf16)], [x_spec]
    else:
        act_in = [query.astype(bf16), key.astype(bf16), value.astype(bf16)]
        act_specs = [x_spec, x_spec, x_spec]

    mask_in, mask_specs = [], []
    if mask is not None:
        m = jnp.asarray(mask)
        if m.ndim == 2:
            m = m[None]
        assert m.ndim == 3
        # Keep the mask compact: key-padding masks stay (B, 1, S); only a
        # genuinely per-query mask becomes (B, S, S).
        mq = S if m.shape[-2] == S else 1
        m = jnp.broadcast_to(m, (B, mq, S)).astype(jnp.int32)
        mask_in = [m]
        mask_specs = [pl.BlockSpec((1, mq, S), lambda b: (b, 0, 0))]

    weights_in = [wq, bq, wk, bk, wv, bv, wo, bo]
    weight_specs = [w_spec, b_spec, w_spec, b_spec, w_spec, b_spec, w_spec, b_spec]

    kernel = _make_kernel(shared_x, mask is not None, h, scale)

    return pl.pallas_call(
        kernel,
        out_shape=jax.ShapeDtypeStruct((B, S, d_model), query.dtype),
        grid_spec=pltpu.PrefetchScalarGridSpec(
            num_scalar_prefetch=0,
            grid=(B,),
            in_specs=act_specs + mask_specs + weight_specs,
            out_specs=out_spec,
            scratch_shapes=[pltpu.VMEM((S, d_model), f32)],   # per-batch ctx
        ),
        compiler_params=pltpu.CompilerParams(
            dimension_semantics=("parallel",),
            # TODO(synk): sweep per generation; keep <= ~48 MiB on v7x (64 MiB
            # physical VMEM), can go higher on v5e/v6e (128 MiB).
            vmem_limit_bytes=48 * 1024 * 1024,
        ),
    )(*(act_in + mask_in + weights_in))


def reference_mha(query, key, value, params, h, mask=None):
    """Pure-JAX (f32) transcription of the PyTorch forward (eval mode)."""
    B, S, d_model = query.shape
    d_k = d_model // h

    def lin(x, w, b):
        return jnp.dot(x, w) + b

    q = lin(query, params["wq"], params["bq"]).reshape(B, S, h, d_k).transpose(0, 2, 1, 3)
    k = lin(key, params["wk"], params["bk"]).reshape(B, S, h, d_k).transpose(0, 2, 1, 3)
    v = lin(value, params["wv"], params["bv"]).reshape(B, S, h, d_k).transpose(0, 2, 1, 3)
    scores = jnp.einsum("bhqd,bhkd->bhqk", q, k) / math.sqrt(d_k)
    if mask is not None:
        m = jnp.broadcast_to(mask, (B, S, S))[:, None, :, :]   # mask.unsqueeze(1)
        scores = jnp.where(m == 0, -1e9, scores)
    p = jax.nn.softmax(scores, axis=-1)
    ctx = jnp.einsum("bhqk,bhkd->bhqd", p, v)
    ctx = ctx.transpose(0, 2, 1, 3).reshape(B, S, d_model)
    return jnp.dot(ctx, params["wo"]) + params["bo"]


if __name__ == "__main__":
    # Small shapes consistent with the module: batch=2, seq=8, heads=4, d_model=32.
    B, S, h, d_model = 2, 8, 4, 32

    key0 = jax.random.PRNGKey(0)
    ks = jax.random.split(key0, 12)

    def init_linear(kw, kb, fan_in, fan_out):
        lim = 1.0 / math.sqrt(fan_in)
        w = jax.random.uniform(kw, (fan_in, fan_out), jnp.float32, -lim, lim)
        b = jax.random.uniform(kb, (fan_out,), jnp.float32, -lim, lim)
        return w, b

    wq, bq = init_linear(ks[0], ks[1], d_model, d_model)
    wk, bk = init_linear(ks[2], ks[3], d_model, d_model)
    wv, bv = init_linear(ks[4], ks[5], d_model, d_model)
    wo, bo = init_linear(ks[6], ks[7], d_model, d_model)
    params = dict(wq=wq, bq=bq, wk=wk, bk=bk, wv=wv, bv=bv, wo=wo, bo=bo)

    query = jax.random.normal(ks[8], (B, S, d_model), jnp.float32)
    key_in = jax.random.normal(ks[9], (B, S, d_model), jnp.float32)
    value_in = jax.random.normal(ks[10], (B, S, d_model), jnp.float32)
    # Padding-style key mask: batch 1 has its last two key positions masked out.
    mask = jnp.ones((B, 1, S), jnp.int32).at[1, :, S - 2:].set(0)

    fwd = jax.jit(partial(multi_headed_attention, h=h))

    # Cross-attention path (separate q/k/v refs) with a compact padding mask.
    out = fwd(query, key_in, value_in, params=params, mask=mask)
    jax.block_until_ready(out)
    ref = reference_mha(query, key_in, value_in, params, h, mask=mask)
    assert out.shape == (B, S, d_model)
    # bf16 matmul operands vs the f32 reference -> loosened tolerance.
    assert float(jnp.max(jnp.abs(out - ref))) < 3e-2, \
        float(jnp.max(jnp.abs(out - ref)))

    # Self-attention path (single shared activation ref), unmasked.
    out_sa = fwd(query, params=params, mask=None)
    jax.block_until_ready(out_sa)
    ref_sa = reference_mha(query, query, query, params, h, mask=None)
    assert float(jnp.max(jnp.abs(out_sa - ref_sa))) < 3e-2, \
        float(jnp.max(jnp.abs(out_sa - ref_sa)))

    print("KERNEL_OK")
</pallas_src>

<mosaic_0001>
module attributes {stable_mosaic.version = 11 : i64} {
  func.func @kernel(%arg0: i32, %arg1: memref<1x8x32xbf16, #tpu.memory_space<vmem>>, %arg2: memref<1x8x32xbf16, #tpu.memory_space<vmem>>, %arg3: memref<1x8x32xbf16, #tpu.memory_space<vmem>>, %arg4: memref<1x1x8xi32, #tpu.memory_space<vmem>>, %arg5: memref<32x32xbf16, #tpu.memory_space<vmem>>, %arg6: memref<1x32xf32, #tpu.memory_space<vmem>>, %arg7: memref<32x32xbf16, #tpu.memory_space<vmem>>, %arg8: memref<1x32xf32, #tpu.memory_space<vmem>>, %arg9: memref<32x32xbf16, #tpu.memory_space<vmem>>, %arg10: memref<1x32xf32, #tpu.memory_space<vmem>>, %arg11: memref<32x32xbf16, #tpu.memory_space<vmem>>, %arg12: memref<1x32xf32, #tpu.memory_space<vmem>>, %arg13: memref<1x8x32xf32, #tpu.memory_space<vmem>>, %arg14: memref<8x32xf32, #tpu.memory_space<vmem>>) attributes {dimension_semantics = [#tpu.dimension_semantics<parallel>], iteration_bounds = array<i64: 2>, scalar_prefetch = 0 : i64, scratch_operands = 1 : i64, tpu.core_type = #tpu.core_type<tc>, window_params = [{transform_indices = @transform_0, window_bounds = array<i64: 1, 8, 32>}, {transform_indices = @transform_1, window_bounds = array<i64: 1, 8, 32>}, {transform_indices = @transform_2, window_bounds = array<i64: 1, 8, 32>}, {transform_indices = @transform_3, window_bounds = array<i64: 1, 1, 8>}, {pipeline_mode = #tpu.pipeline_mode<synchronous>, transform_indices = @transform_4, window_bounds = array<i64: 32, 32>}, {pipeline_mode = #tpu.pipeline_mode<synchronous>, transform_indices = @transform_5, window_bounds = array<i64: 1, 32>}, {pipeline_mode = #tpu.pipeline_mode<synchronous>, transform_indices = @transform_6, window_bounds = array<i64: 32, 32>}, {pipeline_mode = #tpu.pipeline_mode<synchronous>, transform_indices = @transform_7, window_bounds = array<i64: 1, 32>}, {pipeline_mode = #tpu.pipeline_mode<synchronous>, transform_indices = @transform_8, window_bounds = array<i64: 32, 32>}, {pipeline_mode = #tpu.pipeline_mode<synchronous>, transform_indices = @transform_9, window_bounds = array<i64: 1, 32>}, {pipeline_mode = #tpu.pipeline_mode<synchronous>, transform_indices = @transform_10, window_bounds = array<i64: 32, 32>}, {pipeline_mode = #tpu.pipeline_mode<synchronous>, transform_indices = @transform_11, window_bounds = array<i64: 1, 32>}, {transform_indices = @transform_12, window_bounds = array<i64: 1, 8, 32>}]} {
    %c0 = arith.constant 0 : index
    %c0_0 = arith.constant 0 : index
    %c0_1 = arith.constant 0 : index
    %0 = vector.load %arg1[%c0, %c0_0, %c0_1] : memref<1x8x32xbf16, #tpu.memory_space<vmem>>, vector<1x8x32xbf16>
    %1 = vector.shape_cast %0 : vector<1x8x32xbf16> to vector<8x32xbf16>
    %c0_2 = arith.constant 0 : index
    %c0_3 = arith.constant 0 : index
    %2 = vector.load %arg5[%c0_2, %c0_3] : memref<32x32xbf16, #tpu.memory_space<vmem>>, vector<32x32xbf16>
    %cst = arith.constant dense<0.000000e+00> : vector<8x32xf32>
    %3 = tpu.matmul %1, %2, %cst {dimension_numbers = #tpu.dot_dimension_numbers<[1], [0], [0], [1], [0, 0, 1, 1], [], []>} : vector<8x32xbf16>, vector<32x32xbf16>, vector<8x32xf32> -> vector<8x32xf32>
    %c0_4 = arith.constant 0 : index
    %c0_5 = arith.constant 0 : index
    %4 = vector.load %arg6[%c0_4, %c0_5] : memref<1x32xf32, #tpu.memory_space<vmem>>, vector<1x32xf32>
    %5 = vector.broadcast %4 : vector<1x32xf32> to vector<8x32xf32>
    %6 = arith.addf %3, %5 : vector<8x32xf32>
    %c0_6 = arith.constant 0 : index
    %c0_7 = arith.constant 0 : index
    %c0_8 = arith.constant 0 : index
    %7 = vector.load %arg2[%c0_6, %c0_7, %c0_8] : memref<1x8x32xbf16, #tpu.memory_space<vmem>>, vector<1x8x32xbf16>
    %8 = vector.shape_cast %7 : vector<1x8x32xbf16> to vector<8x32xbf16>
    %c0_9 = arith.constant 0 : index
    %c0_10 = arith.constant 0 : index
    %9 = vector.load %arg7[%c0_9, %c0_10] : memref<32x32xbf16, #tpu.memory_space<vmem>>, vector<32x32xbf16>
    %cst_11 = arith.constant dense<0.000000e+00> : vector<8x32xf32>
    %10 = tpu.matmul %8, %9, %cst_11 {dimension_numbers = #tpu.dot_dimension_numbers<[1], [0], [0], [1], [0, 0, 1, 1], [], []>} : vector<8x32xbf16>, vector<32x32xbf16>, vector<8x32xf32> -> vector<8x32xf32>
    %c0_12 = arith.constant 0 : index
    %c0_13 = arith.constant 0 : index
    %11 = vector.load %arg8[%c0_12, %c0_13] : memref<1x32xf32, #tpu.memory_space<vmem>>, vector<1x32xf32>
    %12 = vector.broadcast %11 : vector<1x32xf32> to vector<8x32xf32>
    %13 = arith.addf %10, %12 : vector<8x32xf32>
    %c0_14 = arith.constant 0 : index
    %c0_15 = arith.constant 0 : index
    %c0_16 = arith.constant 0 : index
    %14 = vector.load %arg3[%c0_14, %c0_15, %c0_16] : memref<1x8x32xbf16, #tpu.memory_space<vmem>>, vector<1x8x32xbf16>
    %15 = vector.shape_cast %14 : vector<1x8x32xbf16> to vector<8x32xbf16>
    %c0_17 = arith.constant 0 : index
    %c0_18 = arith.constant 0 : index
    %16 = vector.load %arg9[%c0_17, %c0_18] : memref<32x32xbf16, #tpu.memory_space<vmem>>, vector<32x32xbf16>
    %cst_19 = arith.constant dense<0.000000e+00> : vector<8x32xf32>
    %17 = tpu.matmul %15, %16, %cst_19 {dimension_numbers = #tpu.dot_dimension_numbers<[1], [0], [0], [1], [0, 0, 1, 1], [], []>} : vector<8x32xbf16>, vector<32x32xbf16>, vector<8x32xf32> -> vector<8x32xf32>
    %c0_20 = arith.constant 0 : index
    %c0_21 = arith.constant 0 : index
    %18 = vector.load %arg10[%c0_20, %c0_21] : memref<1x32xf32, #tpu.memory_space<vmem>>, vector<1x32xf32>
    %19 = vector.broadcast %18 : vector<1x32xf32> to vector<8x32xf32>
    %20 = arith.addf %17, %19 : vector<8x32xf32>
    %cst_22 = arith.constant 0.353553385 : f32
    %21 = vector.broadcast %cst_22 : f32 to vector<8x32xf32>
    %22 = arith.mulf %6, %21 : vector<8x32xf32>
    %23 = arith.truncf %22 : vector<8x32xf32> to vector<8x32xbf16>
    %24 = arith.truncf %13 : vector<8x32xf32> to vector<8x32xbf16>
    %25 = arith.truncf %20 : vector<8x32xf32> to vector<8x32xbf16>
    %c0_23 = arith.constant 0 : index
    %c0_24 = arith.constant 0 : index
    %c0_25 = arith.constant 0 : index
    %26 = vector.load %arg4[%c0_23, %c0_24, %c0_25] : memref<1x1x8xi32, #tpu.memory_space<vmem>>, vector<1x1x8xi32>
    %27 = vector.shape_cast %26 : vector<1x1x8xi32> to vector<1x8xi32>
    %c0_i32 = arith.constant 0 : i32
    %28 = vector.broadcast %c0_i32 : i32 to vector<1x8xi32>
    %29 = arith.cmpi eq, %27, %28 : vector<1x8xi32>
    %cst_26 = arith.constant -1.000000e+09 : f32
    %cst_27 = arith.constant 0.000000e+00 : f32
    %30 = vector.broadcast %cst_26 : f32 to vector<1x8xf32>
    %31 = vector.broadcast %cst_27 : f32 to vector<1x8xf32>
    %32 = arith.select %29, %30, %31 : vector<1x8xi1>, vector<1x8xf32>
    %33 = vector.extract_strided_slice %23 {offsets = [0, 0], sizes = [8, 8], strides = [1, 1]} : vector<8x32xbf16> to vector<8x8xbf16>
    %34 = vector.extract_strided_slice %24 {offsets = [0, 0], sizes = [8, 8], strides = [1, 1]} : vector<8x32xbf16> to vector<8x8xbf16>
    %cst_28 = arith.constant dense<0.000000e+00> : vector<8x8xf32>
    %35 = tpu.matmul %33, %34, %cst_28 {dimension_numbers = #tpu.dot_dimension_numbers<[1], [1], [0], [0], [0, 0, 1, 0], [], []>} : vector<8x8xbf16>, vector<8x8xbf16>, vector<8x8xf32> -> vector<8x8xf32>
    %36 = vector.broadcast %32 : vector<1x8xf32> to vector<8x8xf32>
    %37 = arith.addf %35, %36 : vector<8x8xf32>
    %cst_29 = arith.constant dense<0xFF800000> : vector<8xf32>
    %38 = vector.multi_reduction <maximumf>, %37, %cst_29 [1] : vector<8x8xf32> to vector<8xf32>
    %39 = vector.shape_cast %38 : vector<8xf32> to vector<8x1xf32>
    %40 = vector.broadcast %39 : vector<8x1xf32> to vector<8x8xf32>
    %41 = arith.subf %37, %40 : vector<8x8xf32>
    %42 = math.exp %41 : vector<8x8xf32>
    %cst_30 = arith.constant dense<0.000000e+00> : vector<8xf32>
    %43 = vector.multi_reduction <add>, %42, %cst_30 [1] : vector<8x8xf32> to vector<8xf32>
    %44 = vector.shape_cast %43 : vector<8xf32> to vector<8x1xf32>
    %45 = tpu.reciprocal %44 {approx = true} : vector<8x1xf32> -> vector<8x1xf32>
    %46 = arith.truncf %42 : vector<8x8xf32> to vector<8x8xbf16>
    %47 = vector.extract_strided_slice %25 {offsets = [0, 0], sizes = [8, 8], strides = [1, 1]} : vector<8x32xbf16> to vector<8x8xbf16>
    %cst_31 = arith.constant dense<0.000000e+00> : vector<8x8xf32>
    %48 = tpu.matmul %46, %47, %cst_31 {dimension_numbers = #tpu.dot_dimension_numbers<[1], [0], [0], [1], [0, 0, 1, 1], [], []>} : vector<8x8xbf16>, vector<8x8xbf16>, vector<8x8xf32> -> vector<8x8xf32>
    %49 = vector.broadcast %45 : vector<8x1xf32> to vector<8x8xf32>
    %50 = arith.mulf %48, %49 : vector<8x8xf32>
    %c0_32 = arith.constant 0 : index
    %c0_33 = arith.constant 0 : index
    %51 = vector.load %arg14[%c0_32, %c0_33] : memref<8x32xf32, #tpu.memory_space<vmem>>, vector<8x8xf32>
    tpu.vector_store %arg14[%c0_32, %c0_33], %50 {strides = array<i32>} : memref<8x32xf32, #tpu.memory_space<vmem>>, vector<8x8xf32>,
    %52 = vector.extract_strided_slice %23 {offsets = [0, 8], sizes = [8, 8], strides = [1, 1]} : vector<8x32xbf16> to vector<8x8xbf16>
    %53 = vector.extract_strided_slice %24 {offsets = [0, 8], sizes = [8, 8], strides = [1, 1]} : vector<8x32xbf16> to vector<8x8xbf16>
    %cst_34 = arith.constant dense<0.000000e+00> : vector<8x8xf32>
    %54 = tpu.matmul %52, %53, %cst_34 {dimension_numbers = #tpu.dot_dimension_numbers<[1], [1], [0], [0], [0, 0, 1, 0], [], []>} : vector<8x8xbf16>, vector<8x8xbf16>, vector<8x8xf32> -> vector<8x8xf32>
    %55 = vector.broadcast %32 : vector<1x8xf32> to vector<8x8xf32>
    %56 = arith.addf %54, %55 : vector<8x8xf32>
    %cst_35 = arith.constant dense<0xFF800000> : vector<8xf32>
    %57 = vector.multi_reduction <maximumf>, %56, %cst_35 [1] : vector<8x8xf32> to vector<8xf32>
    %58 = vector.shape_cast %57 : vector<8xf32> to vector<8x1xf32>
    %59 = vector.broadcast %58 : vector<8x1xf32> to vector<8x8xf32>
    %60 = arith.subf %56, %59 : vector<8x8xf32>
    %61 = math.exp %60 : vector<8x8xf32>
    %cst_36 = arith.constant dense<0.000000e+00> : vector<8xf32>
    %62 = vector.multi_reduction <add>, %61, %cst_36 [1] : vector<8x8xf32> to vector<8xf32>
    %63 = vector.shape_cast %62 : vector<8xf32> to vector<8x1xf32>
    %64 = tpu.reciprocal %63 {approx = true} : vector<8x1xf32> -> vector<8x1xf32>
    %65 = arith.truncf %61 : vector<8x8xf32> to vector<8x8xbf16>
    %66 = vector.extract_strided_slice %25 {offsets = [0, 8], sizes = [8, 8], strides = [1, 1]} : vector<8x32xbf16> to vector<8x8xbf16>
    %cst_37 = arith.constant dense<0.000000e+00> : vector<8x8xf32>
    %67 = tpu.matmul %65, %66, %cst_37 {dimension_numbers = #tpu.dot_dimension_numbers<[1], [0], [0], [1], [0, 0, 1, 1], [], []>} : vector<8x8xbf16>, vector<8x8xbf16>, vector<8x8xf32> -> vector<8x8xf32>
    %68 = vector.broadcast %64 : vector<8x1xf32> to vector<8x8xf32>
    %69 = arith.mulf %67, %68 : vector<8x8xf32>
    %c0_38 = arith.constant 0 : index
    %c8 = arith.constant 8 : index
    %70 = vector.load %arg14[%c0_38, %c8] : memref<8x32xf32, #tpu.memory_space<vmem>>, vector<8x8xf32>
    tpu.vector_store %arg14[%c0_38, %c8], %69 {strides = array<i32>} : memref<8x32xf32, #tpu.memory_space<vmem>>, vector<8x8xf32>,
    %71 = vector.extract_strided_slice %23 {offsets = [0, 16], sizes = [8, 8], strides = [1, 1]} : vector<8x32xbf16> to vector<8x8xbf16>
    %72 = vector.extract_strided_slice %24 {offsets = [0, 16], sizes = [8, 8], strides = [1, 1]} : vector<8x32xbf16> to vector<8x8xbf16>
    %cst_39 = arith.constant dense<0.000000e+00> : vector<8x8xf32>
    %73 = tpu.matmul %71, %72, %cst_39 {dimension_numbers = #tpu.dot_dimension_numbers<[1], [1], [0], [0], [0, 0, 1, 0], [], []>} : vector<8x8xbf16>, vector<8x8xbf16>, vector<8x8xf32> -> vector<8x8xf32>
    %74 = vector.broadcast %32 : vector<1x8xf32> to vector<8x8xf32>
    %75 = arith.addf %73, %74 : vector<8x8xf32>
    %cst_40 = arith.constant dense<0xFF800000> : vector<8xf32>
    %76 = vector.multi_reduction <maximumf>, %75, %cst_40 [1] : vector<8x8xf32> to vector<8xf32>
    %77 = vector.shape_cast %76 : vector<8xf32> to vector<8x1xf32>
    %78 = vector.broadcast %77 : vector<8x1xf32> to vector<8x8xf32>
    %79 = arith.subf %75, %78 : vector<8x8xf32>
    %80 = math.exp %79 : vector<8x8xf32>
    %cst_41 = arith.constant dense<0.000000e+00> : vector<8xf32>
    %81 = vector.multi_reduction <add>, %80, %cst_41 [1] : vector<8x8xf32> to vector<8xf32>
    %82 = vector.shape_cast %81 : vector<8xf32> to vector<8x1xf32>
    %83 = tpu.reciprocal %82 {approx = true} : vector<8x1xf32> -> vector<8x1xf32>
    %84 = arith.truncf %80 : vector<8x8xf32> to vector<8x8xbf16>
    %85 = vector.extract_strided_slice %25 {offsets = [0, 16], sizes = [8, 8], strides = [1, 1]} : vector<8x32xbf16> to vector<8x8xbf16>
    %cst_42 = arith.constant dense<0.000000e+00> : vector<8x8xf32>
    %86 = tpu.matmul %84, %85, %cst_42 {dimension_numbers = #tpu.dot_dimension_numbers<[1], [0], [0], [1], [0, 0, 1, 1], [], []>} : vector<8x8xbf16>, vector<8x8xbf16>, vector<8x8xf32> -> vector<8x8xf32>
    %87 = vector.broadcast %83 : vector<8x1xf32> to vector<8x8xf32>
    %88 = arith.mulf %86, %87 : vector<8x8xf32>
    %c0_43 = arith.constant 0 : index
    %c16 = arith.constant 16 : index
    %89 = vector.load %arg14[%c0_43, %c16] : memref<8x32xf32, #tpu.memory_space<vmem>>, vector<8x8xf32>
    tpu.vector_store %arg14[%c0_43, %c16], %88 {strides = array<i32>} : memref<8x32xf32, #tpu.memory_space<vmem>>, vector<8x8xf32>,
    %90 = vector.extract_strided_slice %23 {offsets = [0, 24], sizes = [8, 8], strides = [1, 1]} : vector<8x32xbf16> to vector<8x8xbf16>
    %91 = vector.extract_strided_slice %24 {offsets = [0, 24], sizes = [8, 8], strides = [1, 1]} : vector<8x32xbf16> to vector<8x8xbf16>
    %cst_44 = arith.constant dense<0.000000e+00> : vector<8x8xf32>
    %92 = tpu.matmul %90, %91, %cst_44 {dimension_numbers = #tpu.dot_dimension_numbers<[1], [1], [0], [0], [0, 0, 1, 0], [], []>} : vector<8x8xbf16>, vector<8x8xbf16>, vector<8x8xf32> -> vector<8x8xf32>
    %93 = vector.broadcast %32 : vector<1x8xf32> to vector<8x8xf32>
    %94 = arith.addf %92, %93 : vector<8x8xf32>
    %cst_45 = arith.constant dense<0xFF800000> : vector<8xf32>
    %95 = vector.multi_reduction <maximumf>, %94, %cst_45 [1] : vector<8x8xf32> to vector<8xf32>
    %96 = vector.shape_cast %95 : vector<8xf32> to vector<8x1xf32>
    %97 = vector.broadcast %96 : vector<8x1xf32> to vector<8x8xf32>
    %98 = arith.subf %94, %97 : vector<8x8xf32>
    %99 = math.exp %98 : vector<8x8xf32>
    %cst_46 = arith.constant dense<0.000000e+00> : vector<8xf32>
    %100 = vector.multi_reduction <add>, %99, %cst_46 [1] : vector<8x8xf32> to vector<8xf32>
    %101 = vector.shape_cast %100 : vector<8xf32> to vector<8x1xf32>
    %102 = tpu.reciprocal %101 {approx = true} : vector<8x1xf32> -> vector<8x1xf32>
    %103 = arith.truncf %99 : vector<8x8xf32> to vector<8x8xbf16>
    %104 = vector.extract_strided_slice %25 {offsets = [0, 24], sizes = [8, 8], strides = [1, 1]} : vector<8x32xbf16> to vector<8x8xbf16>
    %cst_47 = arith.constant dense<0.000000e+00> : vector<8x8xf32>
    %105 = tpu.matmul %103, %104, %cst_47 {dimension_numbers = #tpu.dot_dimension_numbers<[1], [0], [0], [1], [0, 0, 1, 1], [], []>} : vector<8x8xbf16>, vector<8x8xbf16>, vector<8x8xf32> -> vector<8x8xf32>
    %106 = vector.broadcast %102 : vector<8x1xf32> to vector<8x8xf32>
    %107 = arith.mulf %105, %106 : vector<8x8xf32>
    %c0_48 = arith.constant 0 : index
    %c24 = arith.constant 24 : index
    %108 = vector.load %arg14[%c0_48, %c24] : memref<8x32xf32, #tpu.memory_space<vmem>>, vector<8x8xf32>
    tpu.vector_store %arg14[%c0_48, %c24], %107 {strides = array<i32>} : memref<8x32xf32, #tpu.memory_space<vmem>>, vector<8x8xf32>,
    %c0_49 = arith.constant 0 : index
    %c0_50 = arith.constant 0 : index
    %109 = vector.load %arg14[%c0_49, %c0_50] : memref<8x32xf32, #tpu.memory_space<vmem>>, vector<8x32xf32>
    %110 = arith.truncf %109 : vector<8x32xf32> to vector<8x32xbf16>
    %c0_51 = arith.constant 0 : index
    %c0_52 = arith.constant 0 : index
    %111 = vector.load %arg11[%c0_51, %c0_52] : memref<32x32xbf16, #tpu.memory_space<vmem>>, vector<32x32xbf16>
    %cst_53 = arith.constant dense<0.000000e+00> : vector<8x32xf32>
    %112 = tpu.matmul %110, %111, %cst_53 {dimension_numbers = #tpu.dot_dimension_numbers<[1], [0], [0], [1], [0, 0, 1, 1], [], []>} : vector<8x32xbf16>, vector<32x32xbf16>, vector<8x32xf32> -> vector<8x32xf32>
    %c0_54 = arith.constant 0 : index
    %c0_55 = arith.constant 0 : index
    %113 = vector.load %arg12[%c0_54, %c0_55] : memref<1x32xf32, #tpu.memory_space<vmem>>, vector<1x32xf32>
    %114 = vector.broadcast %113 : vector<1x32xf32> to vector<8x32xf32>
    %115 = arith.addf %112, %114 : vector<8x32xf32>
    %c0_56 = arith.constant 0 : index
    %c0_57 = arith.constant 0 : index
    %c0_58 = arith.constant 0 : index
    %116 = vector.load %arg13[%c0_56, %c0_57, %c0_58] : memref<1x8x32xf32, #tpu.memory_space<vmem>>, vector<1x8x32xf32>
    %117 = vector.shape_cast %116 : vector<1x8x32xf32> to vector<8x32xf32>
    %118 = vector.shape_cast %115 : vector<8x32xf32> to vector<1x8x32xf32>
    tpu.vector_store %arg13[%c0_56, %c0_57, %c0_58], %118 {strides = array<i32>} : memref<1x8x32xf32, #tpu.memory_space<vmem>>, vector<1x8x32xf32>,
    return
  }
  func.func @transform_0(%arg0: i32) -> (i32, i32, i32) {
    %c0_i32 = arith.constant 0 : i32
    %c0_i32_0 = arith.constant 0 : i32
    %c0_i32_1 = arith.constant 0 : i32
    return %arg0, %c0_i32, %c0_i32_0 : i32, i32, i32
  }
  func.func @transform_1(%arg0: i32) -> (i32, i32, i32) {
    %c0_i32 = arith.constant 0 : i32
    %c0_i32_0 = arith.constant 0 : i32
    %c0_i32_1 = arith.constant 0 : i32
    return %arg0, %c0_i32, %c0_i32_0 : i32, i32, i32
  }
  func.func @transform_2(%arg0: i32) -> (i32, i32, i32) {
    %c0_i32 = arith.constant 0 : i32
    %c0_i32_0 = arith.constant 0 : i32
    %c0_i32_1 = arith.constant 0 : i32
    return %arg0, %c0_i32, %c0_i32_0 : i32, i32, i32
  }
  func.func @transform_3(%arg0: i32) -> (i32, i32, i32) {
    %c0_i32 = arith.constant 0 : i32
    %c0_i32_0 = arith.constant 0 : i32
    %c0_i32_1 = arith.constant 0 : i32
    return %arg0, %c0_i32, %c0_i32_0 : i32, i32, i32
  }
  func.func @transform_4(%arg0: i32) -> (i32, i32) {
    %c0_i32 = arith.constant 0 : i32
    %c0_i32_0 = arith.constant 0 : i32
    %c0_i32_1 = arith.constant 0 : i32
    return %c0_i32, %c0_i32_0 : i32, i32
  }
  func.func @transform_5(%arg0: i32) -> (i32, i32) {
    %c0_i32 = arith.constant 0 : i32
    %c0_i32_0 = arith.constant 0 : i32
    %c0_i32_1 = arith.constant 0 : i32
    return %c0_i32, %c0_i32_0 : i32, i32
  }
  func.func @transform_6(%arg0: i32) -> (i32, i32) {
    %c0_i32 = arith.constant 0 : i32
    %c0_i32_0 = arith.constant 0 : i32
    %c0_i32_1 = arith.constant 0 : i32
    return %c0_i32, %c0_i32_0 : i32, i32
  }
  func.func @transform_7(%arg0: i32) -> (i32, i32) {
    %c0_i32 = arith.constant 0 : i32
    %c0_i32_0 = arith.constant 0 : i32
    %c0_i32_1 = arith.constant 0 : i32
    return %c0_i32, %c0_i32_0 : i32, i32
  }
  func.func @transform_8(%arg0: i32) -> (i32, i32) {
    %c0_i32 = arith.constant 0 : i32
    %c0_i32_0 = arith.constant 0 : i32
    %c0_i32_1 = arith.constant 0 : i32
    return %c0_i32, %c0_i32_0 : i32, i32
  }
  func.func @transform_9(%arg0: i32) -> (i32, i32) {
    %c0_i32 = arith.constant 0 : i32
    %c0_i32_0 = arith.constant 0 : i32
    %c0_i32_1 = arith.constant 0 : i32
    return %c0_i32, %c0_i32_0 : i32, i32
  }
  func.func @transform_10(%arg0: i32) -> (i32, i32) {
    %c0_i32 = arith.constant 0 : i32
    %c0_i32_0 = arith.constant 0 : i32
    %c0_i32_1 = arith.constant 0 : i32
    return %c0_i32, %c0_i32_0 : i32, i32
  }
  func.func @transform_11(%arg0: i32) -> (i32, i32) {
    %c0_i32 = arith.constant 0 : i32
    %c0_i32_0 = arith.constant 0 : i32
    %c0_i32_1 = arith.constant 0 : i32
    return %c0_i32, %c0_i32_0 : i32, i32
  }
  func.func @transform_12(%arg0: i32) -> (i32, i32, i32) {
    %c0_i32 = arith.constant 0 : i32
    %c0_i32_0 = arith.constant 0 : i32
    %c0_i32_1 = arith.constant 0 : i32
    return %arg0, %c0_i32, %c0_i32_0 : i32, i32, i32
  }
}

</mosaic_0001>

<llo_original>
// kernel: multi_headed_attention.1
$region0: #{multi_headed_attention.1}
  #allocation0 [shape = 'u32[]', space=smem, size = 0x4, offset = 0x4, fixed_abs, tag = 'smem constant byte address 0x4 - core index']
  #allocation1 [shape = 'u32[144,128]{1,0:T(1,128)}', space=vmem, size = 0x12000, scoped, tag = 'internal scratch']
  #allocation2 [shape = 'f32[8,32]{1,0:T(8,128)}', space=vmem, size = 0x1000, scoped, tag = 'scratch operand']
  %s0 = inlined_call_operand.vmem [shape: bf16[2,8,32], index: 0, kind: input, shape index: {}]
  %s1 = inlined_call_operand.vmem [shape: bf16[2,8,32], index: 1, kind: input, shape index: {}]
  %s2 = inlined_call_operand.vmem [shape: bf16[2,8,32], index: 2, kind: input, shape index: {}]
  %s3 = inlined_call_operand.vmem [shape: s32[2,1,8], index: 3, kind: input, shape index: {}]
  %s4 = inlined_call_operand.vmem [shape: bf16[32,32], index: 4, kind: input, shape index: {}]
  %s5 = inlined_call_operand.vmem [shape: f32[1,32], index: 5, kind: input, shape index: {}]
  %s6 = inlined_call_operand.vmem [shape: bf16[32,32], index: 6, kind: input, shape index: {}]
  %s7 = inlined_call_operand.vmem [shape: f32[1,32], index: 7, kind: input, shape index: {}]
  %s8 = inlined_call_operand.vmem [shape: bf16[32,32], index: 8, kind: input, shape index: {}]
  %s9 = inlined_call_operand.vmem [shape: f32[1,32], index: 9, kind: input, shape index: {}]
  %s10 = inlined_call_operand.vmem [shape: bf16[32,32], index: 10, kind: input, shape index: {}]
  %s11 = inlined_call_operand.vmem [shape: f32[1,32], index: 11, kind: input, shape index: {}]
  %s12 = inlined_call_operand.hbm [shape: f32[2,8,32], index: 12, kind: output, shape index: {}]
  %s13 = sld [smem:[#allocation0]]
  $region81: #{multi_headed_attention.1} parent=0
    _
  %s15 = ssub.s32 1, %s13
  %s16 = scalar_select 0, %s15, %s13
  $region1: #{multi_headed_attention.1} parent=0
    #allocation3 [shape = 'u8[8192]{0}', space=vmem, size = 0x2000, scoped, tag = 'output window, operand 0']
    #allocation4 [shape = 's32[2]{0}', space=sflag, size = 0x8, scoped, tag = 'scoped memory for multi_headed_attention.1']
    %17 = vsyncpa [#allocation4], 0
    %s18 = scalar_lea.sflag [#allocation4], 1
    %19 = vsyncpa %s18, 0
    loop: start=0, step=1, limit=4
    $region2: #{multi_headed_attention.1} parent=1 // loop_pre_header
      _
    $region3: #{multi_headed_attention.1} parent=1 // loop_header
      %s21 = sphi 0, %s25
      %p22 = scmp.ge.s32.totalorder %s21, 4
      %s31 = sphi 0, %s33
      %s34 = sphi 0, %s31
      %s35 = sphi 0, %s34
      %s51 = sphi 0, %s35
      %s57 = sphi 0, %s59
      %s60 = sphi 0, %s57
      %s61 = sphi 0, %s60
      %s77 = sphi 0, %s61
      %s83 = sphi 0, %s85
      %s86 = sphi 0, %s83
      %s87 = sphi 0, %s86
      %s103 = sphi 0, %s87
      %s109 = sphi 0, %s111
      %s112 = sphi 0, %s109
      %s113 = sphi 0, %s112
      %s129 = sphi 0, %s113
      %s133 = sphi 0, %s133
      %s135 = sphi 0, %s133
      %s136 = sphi 0, %s135
      %s150 = sphi 0, %s136
      %s154 = sphi 0, %s154
      %s156 = sphi 0, %s154
      %s157 = sphi 0, %s156
      %s171 = sphi 0, %s157
      %s175 = sphi 0, %s175
      %s177 = sphi 0, %s175
      %s178 = sphi 0, %s177
      %s192 = sphi 0, %s178
      %s196 = sphi 0, %s196
      %s198 = sphi 0, %s196
      %s199 = sphi 0, %s198
      %s213 = sphi 0, %s199
      %s217 = sphi 0, %s217
      %s219 = sphi 0, %s217
      %s220 = sphi 0, %s219
      %s234 = sphi 0, %s220
      %s238 = sphi 0, %s238
      %s240 = sphi 0, %s238
      %s241 = sphi 0, %s240
      %s255 = sphi 0, %s241
      %s259 = sphi 0, %s259
      %s261 = sphi 0, %s259
      %s262 = sphi 0, %s261
      %s276 = sphi 0, %s262
      %s280 = sphi 0, %s280
      %s282 = sphi 0, %s280
      %s283 = sphi 0, %s282
      %s297 = sphi 0, %s283
      %s303 = sphi 0, %s305
      %s306 = sphi 0, %s303
      %s307 = sphi 0, %s306
      %s323 = sphi 0, %s307
    $region4: #{multi_headed_attention.1} parent=1 // loop_header_branch
      %24 = sbr.rel (%p22) target = $region8
    $region5: #{multi_headed_attention.1} parent=1 // loop_body
      %s26 = ssub.s32 %s21, 1
      %s27 = ssub.s32 %s21, 2
      %s28 = sadd.s32 %s21, 1
      %s29 = ssub.s32 %s21, %s28
      %p30 = scmp.eq.s32.totalorder %s29, 0
      %s32 = sadd.s32 %s31, 1
      %s33 = scalar_select %p30, %s31, %s32
      %p36 = pneg %p30
      %p37 = scmp.eq.s32.totalorder %s21, 1
      %p38 = por %p36, %p37
      %p39 = scmp.ne.s32.totalorder %s31, %s34
      %p40 = scmp.eq.s32.totalorder %s21, 0
      %p41 = por %p39, %p40
      %p42 = scmp.ne.s32.totalorder %s31, %s34
      %p43 = scmp.eq.s32.totalorder %s26, 1
      %p44 = por %p42, %p43
      %p45 = scmp.ne.s32.totalorder %s34, %s35
      %p46 = scmp.eq.s32.totalorder %s26, 0
      %p47 = por %p45, %p46
      %p48 = scmp.ne.s32.totalorder %s34, %s35
      %p49 = scmp.eq.s32.totalorder %s27, 1
      %p50 = por %p48, %p49
      %p52 = scmp.ne.s32.totalorder %s35, %s51
      %p53 = scmp.eq.s32.totalorder %s27, 0
      %p54 = por %p52, %p53
      %s55 = ssub.s32 %s21, %s28
      %p56 = scmp.eq.s32.totalorder %s55, 0
      %s58 = sadd.s32 %s57, 1
      %s59 = scalar_select %p56, %s57, %s58
      %p62 = pneg %p56
      %p63 = scmp.eq.s32.totalorder %s21, 1
      %p64 = por %p62, %p63
      %p65 = scmp.ne.s32.totalorder %s57, %s60
      %p66 = scmp.eq.s32.totalorder %s21, 0
      %p67 = por %p65, %p66
      %p68 = scmp.ne.s32.totalorder %s57, %s60
      %p69 = scmp.eq.s32.totalorder %s26, 1
      %p70 = por %p68, %p69
      %p71 = scmp.ne.s32.totalorder %s60, %s61
      %p72 = scmp.eq.s32.totalorder %s26, 0
      %p73 = por %p71, %p72
      %p74 = scmp.ne.s32.totalorder %s60, %s61
      %p75 = scmp.eq.s32.totalorder %s27, 1
      %p76 = por %p74, %p75
      %p78 = scmp.ne.s32.totalorder %s61, %s77
      %p79 = scmp.eq.s32.totalorder %s27, 0
      %p80 = por %p78, %p79
      %s81 = ssub.s32 %s21, %s28
      %p82 = scmp.eq.s32.totalorder %s81, 0
      %s84 = sadd.s32 %s83, 1
      %s85 = scalar_select %p82, %s83, %s84
      %p88 = pneg %p82
      %p89 = scmp.eq.s32.totalorder %s21, 1
      %p90 = por %p88, %p89
      %p91 = scmp.ne.s32.totalorder %s83, %s86
      %p92 = scmp.eq.s32.totalorder %s21, 0
      %p93 = por %p91, %p92
      %p94 = scmp.ne.s32.totalorder %s83, %s86
      %p95 = scmp.eq.s32.totalorder %s26, 1
      %p96 = por %p94, %p95
      %p97 = scmp.ne.s32.totalorder %s86, %s87
      %p98 = scmp.eq.s32.totalorder %s26, 0
      %p99 = por %p97, %p98
      %p100 = scmp.ne.s32.totalorder %s86, %s87
      %p101 = scmp.eq.s32.totalorder %s27, 1
      %p102 = por %p100, %p101
      %p104 = scmp.ne.s32.totalorder %s87, %s103
      %p105 = scmp.eq.s32.totalorder %s27, 0
      %p106 = por %p104, %p105
      %s107 = ssub.s32 %s21, %s28
      %p108 = scmp.eq.s32.totalorder %s107, 0
      %s110 = sadd.s32 %s109, 1
      %s111 = scalar_select %p108, %s109, %s110
      %p114 = pneg %p108
      %p115 = scmp.eq.s32.totalorder %s21, 1
      %p116 = por %p114, %p115
      %p117 = scmp.ne.s32.totalorder %s109, %s112
      %p118 = scmp.eq.s32.totalorder %s21, 0
      %p119 = por %p117, %p118
      %p120 = scmp.ne.s32.totalorder %s109, %s112
      %p121 = scmp.eq.s32.totalorder %s26, 1
      %p122 = por %p120, %p121
      %p123 = scmp.ne.s32.totalorder %s112, %s113
      %p124 = scmp.eq.s32.totalorder %s26, 0
      %p125 = por %p123, %p124
      %p126 = scmp.ne.s32.totalorder %s112, %s113
      %p127 = scmp.eq.s32.totalorder %s27, 1
      %p128 = por %p126, %p127
      %p130 = scmp.ne.s32.totalorder %s113, %s129
      %p131 = scmp.eq.s32.totalorder %s27, 0
      %p132 = por %p130, %p131
      %s134 = sadd.s32 %s133, 1
      %p137 = scmp.eq.s32.totalorder %s21, 1
      %p138 = scmp.ne.s32.totalorder %s133, %s135
      %p139 = scmp.eq.s32.totalorder %s21, 0
      %p140 = por %p138, %p139
      %p141 = scmp.ne.s32.totalorder %s133, %s135
      %p142 = scmp.eq.s32.totalorder %s26, 1
      %p143 = por %p141, %p142
      %p144 = scmp.ne.s32.totalorder %s135, %s136
      %p145 = scmp.eq.s32.totalorder %s26, 0
      %p146 = por %p144, %p145
      %p147 = scmp.ne.s32.totalorder %s135, %s136
      %p148 = scmp.eq.s32.totalorder %s27, 1
      %p149 = por %p147, %p148
      %p151 = scmp.ne.s32.totalorder %s136, %s150
      %p152 = scmp.eq.s32.totalorder %s27, 0
      %p153 = por %p151, %p152
      %s155 = sadd.s32 %s154, 1
      %p158 = scmp.eq.s32.totalorder %s21, 1
      %p159 = scmp.ne.s32.totalorder %s154, %s156
      %p160 = scmp.eq.s32.totalorder %s21, 0
      %p161 = por %p159, %p160
      %p162 = scmp.ne.s32.totalorder %s154, %s156
      %p163 = scmp.eq.s32.totalorder %s26, 1
      %p164 = por %p162, %p163
      %p165 = scmp.ne.s32.totalorder %s156, %s157
      %p166 = scmp.eq.s32.totalorder %s26, 0
      %p167 = por %p165, %p166
      %p168 = scmp.ne.s32.totalorder %s156, %s157
      %p169 = scmp.eq.s32.totalorder %s27, 1
      %p170 = por %p168, %p169
      %p172 = scmp.ne.s32.totalorder %s157, %s171
      %p173 = scmp.eq.s32.totalorder %s27, 0
      %p174 = por %p172, %p173
      %s176 = sadd.s32 %s175, 1
      %p179 = scmp.eq.s32.totalorder %s21, 1
      %p180 = scmp.ne.s32.totalorder %s175, %s177
      %p181 = scmp.eq.s32.totalorder %s21, 0
      %p182 = por %p180, %p181
      %p183 = scmp.ne.s32.totalorder %s175, %s177
      %p184 = scmp.eq.s32.totalorder %s26, 1
      %p185 = por %p183, %p184
      %p186 = scmp.ne.s32.totalorder %s177, %s178
      %p187 = scmp.eq.s32.totalorder %s26, 0
      %p188 = por %p186, %p187
      %p189 = scmp.ne.s32.totalorder %s177, %s178
      %p190 = scmp.eq.s32.totalorder %s27, 1
      %p191 = por %p189, %p190
      %p193 = scmp.ne.s32.totalorder %s178, %s192
      %p194 = scmp.eq.s32.totalorder %s27, 0
      %p195 = por %p193, %p194
      %s197 = sadd.s32 %s196, 1
      %p200 = scmp.eq.s32.totalorder %s21, 1
      %p201 = scmp.ne.s32.totalorder %s196, %s198
      %p202 = scmp.eq.s32.totalorder %s21, 0
      %p203 = por %p201, %p202
      %p204 = scmp.ne.s32.totalorder %s196, %s198
      %p205 = scmp.eq.s32.totalorder %s26, 1
      %p206 = por %p204, %p205
      %p207 = scmp.ne.s32.totalorder %s198, %s199
      %p208 = scmp.eq.s32.totalorder %s26, 0
      %p209 = por %p207, %p208
      %p210 = scmp.ne.s32.totalorder %s198, %s199
      %p211 = scmp.eq.s32.totalorder %s27, 1
      %p212 = por %p210, %p211
      %p214 = scmp.ne.s32.totalorder %s199, %s213
      %p215 = scmp.eq.s32.totalorder %s27, 0
      %p216 = por %p214, %p215
      %s218 = sadd.s32 %s217, 1
      %p221 = scmp.eq.s32.totalorder %s21, 1
      %p222 = scmp.ne.s32.totalorder %s217, %s219
      %p223 = scmp.eq.s32.totalorder %s21, 0
      %p224 = por %p222, %p223
      %p225 = scmp.ne.s32.totalorder %s217, %s219
      %p226 = scmp.eq.s32.totalorder %s26, 1
      %p227 = por %p225, %p226
      %p228 = scmp.ne.s32.totalorder %s219, %s220
      %p229 = scmp.eq.s32.totalorder %s26, 0
      %p230 = por %p228, %p229
      %p231 = scmp.ne.s32.totalorder %s219, %s220
      %p232 = scmp.eq.s32.totalorder %s27, 1
      %p233 = por %p231, %p232
      %p235 = scmp.ne.s32.totalorder %s220, %s234
      %p236 = scmp.eq.s32.totalorder %s27, 0
      %p237 = por %p235, %p236
      %s239 = sadd.s32 %s238, 1
      %p242 = scmp.eq.s32.totalorder %s21, 1
      %p243 = scmp.ne.s32.totalorder %s238, %s240
      %p244 = scmp.eq.s32.totalorder %s21, 0
      %p245 = por %p243, %p244
      %p246 = scmp.ne.s32.totalorder %s238, %s240
      %p247 = scmp.eq.s32.totalorder %s26, 1
      %p248 = por %p246, %p247
      %p249 = scmp.ne.s32.totalorder %s240, %s241
      %p250 = scmp.eq.s32.totalorder %s26, 0
      %p251 = por %p249, %p250
      %p252 = scmp.ne.s32.totalorder %s240, %s241
      %p253 = scmp.eq.s32.totalorder %s27, 1
      %p254 = por %p252, %p253
      %p256 = scmp.ne.s32.totalorder %s241, %s255
      %p257 = scmp.eq.s32.totalorder %s27, 0
      %p258 = por %p256, %p257
      %s260 = sadd.s32 %s259, 1
      %p263 = scmp.eq.s32.totalorder %s21, 1
      %p264 = scmp.ne.s32.totalorder %s259, %s261
      %p265 = scmp.eq.s32.totalorder %s21, 0
      %p266 = por %p264, %p265
      %p267 = scmp.ne.s32.totalorder %s259, %s261
      %p268 = scmp.eq.s32.totalorder %s26, 1
      %p269 = por %p267, %p268
      %p270 = scmp.ne.s32.totalorder %s261, %s262
      %p271 = scmp.eq.s32.totalorder %s26, 0
      %p272 = por %p270, %p271
      %p273 = scmp.ne.s32.totalorder %s261, %s262
      %p274 = scmp.eq.s32.totalorder %s27, 1
      %p275 = por %p273, %p274
      %p277 = scmp.ne.s32.totalorder %s262, %s276
      %p278 = scmp.eq.s32.totalorder %s27, 0
      %p279 = por %p277, %p278
      %s281 = sadd.s32 %s280, 1
      %p284 = scmp.eq.s32.totalorder %s21, 1
      %p285 = scmp.ne.s32.totalorder %s280, %s282
      %p286 = scmp.eq.s32.totalorder %s21, 0
      %p287 = por %p285, %p286
      %p288 = scmp.ne.s32.totalorder %s280, %s282
      %p289 = scmp.eq.s32.totalorder %s26, 1
      %p290 = por %p288, %p289
      %p291 = scmp.ne.s32.totalorder %s282, %s283
      %p292 = scmp.eq.s32.totalorder %s26, 0
      %p293 = por %p291, %p292
      %p294 = scmp.ne.s32.totalorder %s282, %s283
      %p295 = scmp.eq.s32.totalorder %s27, 1
      %p296 = por %p294, %p295
      %p298 = scmp.ne.s32.totalorder %s283, %s297
      %p299 = scmp.eq.s32.totalorder %s27, 0
      %p300 = por %p298, %p299
      %s301 = ssub.s32 %s21, %s28
      %p302 = scmp.eq.s32.totalorder %s301, 0
      %s304 = sadd.s32 %s303, 1
      %s305 = scalar_select %p302, %s303, %s304
      %p308 = pneg %p302
      %p309 = scmp.eq.s32.totalorder %s21, 1
      %p310 = por %p308, %p309
      %p311 = scmp.ne.s32.totalorder %s303, %s306
      %p312 = scmp.eq.s32.totalorder %s21, 0
      %p313 = por %p311, %p312
      %p314 = scmp.ne.s32.totalorder %s303, %s306
      %p315 = scmp.eq.s32.totalorder %s26, 1
      %p316 = por %p314, %p315
      %p317 = scmp.ne.s32.totalorder %s306, %s307
      %p318 = scmp.eq.s32.totalorder %s26, 0
      %p319 = por %p317, %p318
      %p320 = scmp.ne.s32.totalorder %s306, %s307
      %p321 = scmp.eq.s32.totalorder %s27, 1
      %p322 = por %p320, %p321
      %p324 = scmp.ne.s32.totalorder %s307, %s323
      %p325 = scmp.eq.s32.totalorder %s27, 0
      %p326 = por %p324, %p325
      %p327 = scmp.le.s32.totalorder 1, %s21
      %p328 = scmp.lt.s32.totalorder %s21, 3
      %p329 = pnand %p327, %p328
      %p330 = pneg %p329
      // Predicated region
      $region9: #{multi_headed_attention.1} parent=5 // pred_check
        _
      $region10: #{multi_headed_attention.1} parent=5 // pred_check_branch
        %332 = sbr.rel (%p329) target = $region12
      $region11: #{multi_headed_attention.1} parent=5 // pred_region
        %s333 = ssub.s32 %s21, 1
        // Predicated region
        $region13: #{multi_headed_attention.1} parent=11 // pred_check
          %p334 = pneg %p146
        $region14: #{multi_headed_attention.1} parent=11 // pred_check_branch
          %336 = sbr.rel (%p334) target = $region16
        $region15: #{multi_headed_attention.1} parent=11 // pred_region
          _
        $region16: #{multi_headed_attention.1} parent=11 // pred_fallthru
          _
        // Predicated region
        $region17: #{multi_headed_attention.1} parent=11 // pred_check
          %p337 = pneg %p167
        $region18: #{multi_headed_attention.1} parent=11 // pred_check_branch
          %339 = sbr.rel (%p337) target = $region20
        $region19: #{multi_headed_attention.1} parent=11 // pred_region
          _
        $region20: #{multi_headed_attention.1} parent=11 // pred_fallthru
          _
        // Predicated region
        $region21: #{multi_headed_attention.1} parent=11 // pred_check
          %p340 = pneg %p188
        $region22: #{multi_headed_attention.1} parent=11 // pred_check_branch
          %342 = sbr.rel (%p340) target = $region24
        $region23: #{multi_headed_attention.1} parent=11 // pred_region
          _
        $region24: #{multi_headed_attention.1} parent=11 // pred_fallthru
          _
        // Predicated region
        $region25: #{multi_headed_attention.1} parent=11 // pred_check
          %p343 = pneg %p209
        $region26: #{multi_headed_attention.1} parent=11 // pred_check_branch
          %345 = sbr.rel (%p343) target = $region28
        $region27: #{multi_headed_attention.1} parent=11 // pred_region
          _
        $region28: #{multi_headed_attention.1} parent=11 // pred_fallthru
          _
        // Predicated region
        $region29: #{multi_headed_attention.1} parent=11 // pred_check
          %p346 = pneg %p230
        $region30: #{multi_headed_attention.1} parent=11 // pred_check_branch
          %348 = sbr.rel (%p346) target = $region32
        $region31: #{multi_headed_attention.1} parent=11 // pred_region
          _
        $region32: #{multi_headed_attention.1} parent=11 // pred_fallthru
          _
        // Predicated region
        $region33: #{multi_headed_attention.1} parent=11 // pred_check
          %p349 = pneg %p251
        $region34: #{multi_headed_attention.1} parent=11 // pred_check_branch
          %351 = sbr.rel (%p349) target = $region36
        $region35: #{multi_headed_attention.1} parent=11 // pred_region
          _
        $region36: #{multi_headed_attention.1} parent=11 // pred_fallthru
          _
        // Predicated region
        $region37: #{multi_headed_attention.1} parent=11 // pred_check
          %p352 = pneg %p272
        $region38: #{multi_headed_attention.1} parent=11 // pred_check_branch
          %354 = sbr.rel (%p352) target = $region40
        $region39: #{multi_headed_attention.1} parent=11 // pred_region
          _
        $region40: #{multi_headed_attention.1} parent=11 // pred_fallthru
          _
        // Predicated region
        $region41: #{multi_headed_attention.1} parent=11 // pred_check
          %p355 = pneg %p293
        $region42: #{multi_headed_attention.1} parent=11 // pred_check_branch
          %357 = sbr.rel (%p355) target = $region44
        $region43: #{multi_headed_attention.1} parent=11 // pred_region
          _
        $region44: #{multi_headed_attention.1} parent=11 // pred_fallthru
          _
      $region12: #{multi_headed_attention.1} parent=5 // pred_fallthru
        _
      %p358 = scmp.lt.s32.totalorder %s21, 2
      // Predicated region
      $region45: #{multi_headed_attention.1} parent=5 // pred_check
        %p359 = pneg %p358
      $region46: #{multi_headed_attention.1} parent=5 // pred_check_branch
        %361 = sbr.rel (%p359) target = $region48
      $region47: #{multi_headed_attention.1} parent=5 // pred_region
        // Predicated region
        $region49: #{multi_headed_attention.1} parent=47 // pred_check
          %p362 = pneg %p41
        $region50: #{multi_headed_attention.1} parent=47 // pred_check_branch
          %364 = sbr.rel (%p362) target = $region52
        $region51: #{multi_headed_attention.1} parent=47 // pred_region
          %p365 = scmp.lt.s32.totalorder %s21, 1
          %s366 = scalar_select %p365, %s21, 1
          %s367 = smul.addr %s366, 4
          %s368 = scalar_lea.vmem %s0, %s367
        $region52: #{multi_headed_attention.1} parent=47 // pred_fallthru
          _
        // Predicated region
        $region53: #{multi_headed_attention.1} parent=47 // pred_check
          %p369 = pneg %p67
        $region54: #{multi_headed_attention.1} parent=47 // pred_check_branch
          %371 = sbr.rel (%p369) target = $region56
        $region55: #{multi_headed_attention.1} parent=47 // pred_region
          %p372 = scmp.lt.s32.totalorder %s21, 1
          %s373 = scalar_select %p372, %s21, 1
          %s374 = smul.addr %s373, 4
          %s375 = scalar_lea.vmem %s1, %s374
        $region56: #{multi_headed_attention.1} parent=47 // pred_fallthru
          _
        // Predicated region
        $region57: #{multi_headed_attention.1} parent=47 // pred_check
          %p376 = pneg %p93
        $region58: #{multi_headed_attention.1} parent=47 // pred_check_branch
          %378 = sbr.rel (%p376) target = $region60
        $region59: #{multi_headed_attention.1} parent=47 // pred_region
          %p379 = scmp.lt.s32.totalorder %s21, 1
          %s380 = scalar_select %p379, %s21, 1
          %s381 = smul.addr %s380, 4
          %s382 = scalar_lea.vmem %s2, %s381
        $region60: #{multi_headed_attention.1} parent=47 // pred_fallthru
          _
        // Predicated region
        $region61: #{multi_headed_attention.1} parent=47 // pred_check
          %p383 = pneg %p119
        $region62: #{multi_headed_attention.1} parent=47 // pred_check_branch
          %385 = sbr.rel (%p383) target = $region64
        $region63: #{multi_headed_attention.1} parent=47 // pred_region
          %p386 = scmp.lt.s32.totalorder %s21, 1
          %s387 = scalar_select %p386, %s21, 1
          %s388 = scalar_lea.vmem %s3, %s387
        $region64: #{multi_headed_attention.1} parent=47 // pred_fallthru
          _
      $region48: #{multi_headed_attention.1} parent=5 // pred_fallthru
        _
      %p389 = scmp.le.s32.totalorder 1, %s21
      %p390 = scmp.lt.s32.totalorder %s21, 3
      %p391 = pnand %p389, %p390
      %p392 = pneg %p391
      // Predicated region
      $region65: #{multi_headed_attention.1} parent=5 // pred_check
        _
      $region66: #{multi_headed_attention.1} parent=5 // pred_check_branch
        %394 = sbr.rel (%p391) target = $region68
      $region67: #{multi_headed_attention.1} parent=5 // pred_region
        %s395 = ssub.s32 %s21, 1
        %p396 = scmp.lt.s32.totalorder %s26, 1
        %s397 = scalar_select %p396, %s26, 1
        %s398 = smul.addr %s397, 4
        %s399 = scalar_lea.vmem %s0, %s398
        %p400 = pneg %p47
        %p401 = pneg %p44
        %p402 = scmp.lt.s32.totalorder %s26, 1
        %s403 = scalar_select %p402, %s26, 1
        %s404 = smul.addr %s403, 4
        %s405 = scalar_lea.vmem %s1, %s404
        %p406 = pneg %p73
        %p407 = pneg %p70
        %p408 = scmp.lt.s32.totalorder %s26, 1
        %s409 = scalar_select %p408, %s26, 1
        %s410 = smul.addr %s409, 4
        %s411 = scalar_lea.vmem %s2, %s410
        %p412 = pneg %p99
        %p413 = pneg %p96
        %p414 = scmp.lt.s32.totalorder %s26, 1
        %s415 = scalar_select %p414, %s26, 1
        %s416 = scalar_lea.vmem %s3, %s415
        %p417 = pneg %p125
        %p418 = pneg %p122
        %p419 = pneg %p146
        %p420 = pneg %p143
        %p421 = pneg %p167
        %p422 = pneg %p164
        %p423 = pneg %p188
        %p424 = pneg %p185
        %p425 = pneg %p209
        %p426 = pneg %p206
        %p427 = pneg %p230
        %p428 = pneg %p227
        %p429 = pneg %p251
        %p430 = pneg %p248
        %p431 = pneg %p272
        %p432 = pneg %p269
        %p433 = pneg %p293
        %p434 = pneg %p290
        %p435 = pneg %p319
        %p436 = pneg %p316
        %s437 = sand.u32 %s306, 1
        %s438 = scalar_lea.sflag [#allocation4], %s437
        %s439 = sand.u32 %s306, 1
        %s440 = smul.addr %s439, 8
        %s441 = scalar_lea.vmem [#allocation3], %s440
        %p442 = scmp.lt.s32.totalorder %s26, 1
        %s443 = scalar_select %p442, %s26, 1
        %s444 = smul.addr %s443, 4
        %s445 = scalar_lea.vmem %s0, %s444
        %p446 = scmp.lt.s32.totalorder %s26, 1
        %s447 = scalar_select %p446, %s26, 1
        %s448 = smul.addr %s447, 4
        %s449 = scalar_lea.vmem %s1, %s448
        %p450 = scmp.lt.s32.totalorder %s26, 1
        %s451 = scalar_select %p450, %s26, 1
        %s452 = smul.addr %s451, 4
        %s453 = scalar_lea.vmem %s2, %s452
        %p454 = scmp.lt.s32.totalorder %s26, 1
        %s455 = scalar_select %p454, %s26, 1
        %s456 = scalar_lea.vmem %s3, %s455
        %v458 = vld [vmem:[%s445] sm:$0xf]
        %v459 = vld [vmem:[%s4] sm:$0xf]
        %v460 = vld [vmem:[%s4 + $0x4] sm:$0xf]
        %v461 = vld [vmem:[%s4 + $0x8] sm:$0xf]
        %v462 = vld [vmem:[%s4 + $0xc] sm:$0xf]
        %v463 = vld [vmem:[%s5] sm:$0x1]
        %v465 = vlaneseq
        %v466 = vshrl.u32 %v465, 7
        %v467 = vsub.s32 0, %v466
        %v468 = vrot.slane %v463, %v467
        %v474 = vunpack.c.l.b16 %v459
        %v475 = vunpack.c.l.b16 %v460
        %v476 = vunpack.c.l.b16 %v461
        %v477 = vunpack.c.l.b16 %v462
        %v478 = vpack.c.b16 %v475, %v474
        %v479 = vpack.c.b16 %v477, %v476
        %vm482 = vcmask 261120
        %v484 = vsel %vm482, %v458, 0
        %486 = vmatprep.subr.bf16.mxu0 0
        %487 = vmatpush1.bf16.msra.mxu0 %v478
        %488 = vmatprep.subr.bf16.mxu0 0
        %489 = vmatpush1.bf16.msra.mxu0 %v479
        %490 = vmatprep.subr.bf16.mxu0 0
        %491 = vmatpush1.bf16.msra.mxu0 0
        %492 = vmatprep.subr.bf16.mxu0 0
        %493 = vmatpush1.bf16.msra.mxu0 0
        %494 = vmatprep.subr.bf16.mxu0 0
        %495 = vmatpush1.bf16.msra.mxu0 0
        %496 = vmatprep.subr.bf16.mxu0 0
        %497 = vmatpush1.bf16.msra.mxu0 0
        %498 = vmatprep.subr.bf16.mxu0 0
        %499 = vmatpush1.bf16.msra.mxu0 0
        %500 = vmatprep.subr.bf16.mxu0 0
        %501 = vmatpush1.bf16.msra.mxu0 0
        %502 = vmatprep.subr.bf16.mxu0 0
        %503 = vmatpush1.bf16.msra.mxu0 0
        %504 = vmatprep.subr.bf16.mxu0 0
        %505 = vmatpush1.bf16.msra.mxu0 0
        %506 = vmatprep.subr.bf16.mxu0 0
        %507 = vmatpush1.bf16.msra.mxu0 0
        %508 = vmatprep.subr.bf16.mxu0 0
        %509 = vmatpush1.bf16.msra.mxu0 0
        %510 = vmatprep.subr.bf16.mxu0 0
        %511 = vmatpush1.bf16.msra.mxu0 0
        %512 = vmatprep.subr.bf16.mxu0 0
        %513 = vmatpush1.bf16.msra.mxu0 0
        %514 = vmatprep.subr.bf16.mxu0 0
        %515 = vmatpush1.bf16.msra.mxu0 0
        %516 = vmatprep.subr.bf16.mxu0 0
        %517 = vmatpush1.bf16.msra.mxu0 0
        %518 = vmatprep.mubr.bf16.mxu0 0
        %519 = vmatmul.mubr.bf16.gmra.mrb[0].mxu0 %v484
        %v520 = vpop.f32.mrb[0].mxu0
        %v521 = vadd.f32 %v468, %v520
        %v522 = vpop.f32.mrb[0].mxu0
        %v523 = vpop.f32.mrb[0].mxu0
        %v524 = vpop.f32.mrb[0].mxu0
        %525 = vdwg.mxu0
        %v526 = vld [vmem:[%s449] sm:$0xf]
        %v527 = vld [vmem:[%s6] sm:$0xf]
        %v528 = vld [vmem:[%s6 + $0x4] sm:$0xf]
        %v529 = vld [vmem:[%s6 + $0x8] sm:$0xf]
        %v530 = vld [vmem:[%s6 + $0xc] sm:$0xf]
        %v531 = vld [vmem:[%s7] sm:$0x1]
        %v533 = vlaneseq
        %v534 = vshrl.u32 %v533, 7
        %v535 = vsub.s32 0, %v534
        %v536 = vrot.slane %v531, %v535
        %v542 = vunpack.c.l.b16 %v527
        %v543 = vunpack.c.l.b16 %v528
        %v544 = vunpack.c.l.b16 %v529
        %v545 = vunpack.c.l.b16 %v530
        %v546 = vpack.c.b16 %v543, %v542
        %v547 = vpack.c.b16 %v545, %v544
        %v551 = vsel %vm482, %v526, 0
        %553 = vmatprep.subr.bf16.mxu0 0
        %554 = vmatpush1.bf16.msra.mxu0 %v546
        %555 = vmatprep.subr.bf16.mxu0 0
        %556 = vmatpush1.bf16.msra.mxu0 %v547
        %557 = vmatprep.subr.bf16.mxu0 0
        %558 = vmatpush1.bf16.msra.mxu0 0
        %559 = vmatprep.subr.bf16.mxu0 0
        %560 = vmatpush1.bf16.msra.mxu0 0
        %561 = vmatprep.subr.bf16.mxu0 0
        %562 = vmatpush1.bf16.msra.mxu0 0
        %563 = vmatprep.subr.bf16.mxu0 0
        %564 = vmatpush1.bf16.msra.mxu0 0
        %565 = vmatprep.subr.bf16.mxu0 0
        %566 = vmatpush1.bf16.msra.mxu0 0
        %567 = vmatprep.subr.bf16.mxu0 0
        %568 = vmatpush1.bf16.msra.mxu0 0
        %569 = vmatprep.subr.bf16.mxu0 0
        %570 = vmatpush1.bf16.msra.mxu0 0
        %571 = vmatprep.subr.bf16.mxu0 0
        %572 = vmatpush1.bf16.msra.mxu0 0
        %573 = vmatprep.subr.bf16.mxu0 0
        %574 = vmatpush1.bf16.msra.mxu0 0
        %575 = vmatprep.subr.bf16.mxu0 0
        %576 = vmatpush1.bf16.msra.mxu0 0
        %577 = vmatprep.subr.bf16.mxu0 0
        %578 = vmatpush1.bf16.msra.mxu0 0
        %579 = vmatprep.subr.bf16.mxu0 0
        %580 = vmatpush1.bf16.msra.mxu0 0
        %581 = vmatprep.subr.bf16.mxu0 0
        %582 = vmatpush1.bf16.msra.mxu0 0
        %583 = vmatprep.subr.bf16.mxu0 0
        %584 = vmatpush1.bf16.msra.mxu0 0
        %585 = vmatprep.mubr.bf16.mxu0 0
        %586 = vmatmul.mubr.bf16.gmra.mrb[0].mxu0 %v551
        %v587 = vpop.f32.mrb[0].mxu0
        %v588 = vadd.f32 %v536, %v587
        %v589 = vpop.f32.mrb[0].mxu0
        %v590 = vpop.f32.mrb[0].mxu0
        %v591 = vpop.f32.mrb[0].mxu0
        %592 = vdwg.mxu0
        %v593 = vld [vmem:[%s453] sm:$0xf]
        %v594 = vld [vmem:[%s8] sm:$0xf]
        %v595 = vld [vmem:[%s8 + $0x4] sm:$0xf]
        %v596 = vld [vmem:[%s8 + $0x8] sm:$0xf]
        %v597 = vld [vmem:[%s8 + $0xc] sm:$0xf]
        %v598 = vld [vmem:[%s9] sm:$0x1]
        %v600 = vlaneseq
        %v601 = vshrl.u32 %v600, 7
        %v602 = vsub.s32 0, %v601
        %v603 = vrot.slane %v598, %v602
        %v609 = vunpack.c.l.b16 %v594
        %v610 = vunpack.c.l.b16 %v595
        %v611 = vunpack.c.l.b16 %v596
        %v612 = vunpack.c.l.b16 %v597
        %v613 = vpack.c.b16 %v610, %v609
        %v614 = vpack.c.b16 %v612, %v611
        %v618 = vsel %vm482, %v593, 0
        %620 = vmatprep.subr.bf16.mxu0 0
        %621 = vmatpush1.bf16.msra.mxu0 %v613
        %622 = vmatprep.subr.bf16.mxu0 0
        %623 = vmatpush1.bf16.msra.mxu0 %v614
        %624 = vmatprep.subr.bf16.mxu0 0
        %625 = vmatpush1.bf16.msra.mxu0 0
        %626 = vmatprep.subr.bf16.mxu0 0
        %627 = vmatpush1.bf16.msra.mxu0 0
        %628 = vmatprep.subr.bf16.mxu0 0
        %629 = vmatpush1.bf16.msra.mxu0 0
        %630 = vmatprep.subr.bf16.mxu0 0
        %631 = vmatpush1.bf16.msra.mxu0 0
        %632 = vmatprep.subr.bf16.mxu0 0
        %633 = vmatpush1.bf16.msra.mxu0 0
        %634 = vmatprep.subr.bf16.mxu0 0
        %635 = vmatpush1.bf16.msra.mxu0 0
        %636 = vmatprep.subr.bf16.mxu0 0
        %637 = vmatpush1.bf16.msra.mxu0 0
        %638 = vmatprep.subr.bf16.mxu0 0
        %639 = vmatpush1.bf16.msra.mxu0 0
        %640 = vmatprep.subr.bf16.mxu0 0
        %641 = vmatpush1.bf16.msra.mxu0 0
        %642 = vmatprep.subr.bf16.mxu0 0
        %643 = vmatpush1.bf16.msra.mxu0 0
        %644 = vmatprep.subr.bf16.mxu0 0
        %645 = vmatpush1.bf16.msra.mxu0 0
        %646 = vmatprep.subr.bf16.mxu0 0
        %647 = vmatpush1.bf16.msra.mxu0 0
        %648 = vmatprep.subr.bf16.mxu0 0
        %649 = vmatpush1.bf16.msra.mxu0 0
        %650 = vmatprep.subr.bf16.mxu0 0
        %651 = vmatpush1.bf16.msra.mxu0 0
        %652 = vmatprep.mubr.bf16.mxu0 0
        %653 = vmatmul.mubr.bf16.gmra.mrb[0].mxu0 %v618
        %v654 = vpop.f32.mrb[0].mxu0
        %v655 = vadd.f32 %v603, %v654
        %v656 = vpop.f32.mrb[0].mxu0
        %v657 = vpop.f32.mrb[0].mxu0
        %v658 = vpop.f32.mrb[0].mxu0
        %659 = vdwg.mxu0
        %v660 = vmul.f32 %v521, 0.35355338
        %v661 = vpack.c.bf16 %v660, %v660
        %v662 = vpack.c.bf16 %v588, %v588
        %v663 = vpack.c.bf16 %v655, %v655
        %v664 = vld [vmem:[%s456] sm:$0x1]
        %vm665 = vcmp.eq.s32.totalorder %v664, 0
        %v666 = vsel %vm665, -1e+09, 0.0
        %v668 = vlaneseq
        %v669 = vshrl.u32 %v668, 7
        %v670 = vsub.s32 0, %v669
        %v671 = vrot.slane %v666, %v670
        %vm673 = vcmask 64512
        %v675 = vsel %vm673, %v661, 0
        %v678 = vsel %vm673, %v662, 0
        %680 = vmatprep.subr.bf16.mxu0 0
        %681 = vmatpush1.bf16.xpose.msra.mxu0 %v678
        %682 = vmatprep.subr.bf16.mxu0 0
        %683 = vmatpush1.bf16.xpose.msra.mxu0 0
        %684 = vmatprep.subr.bf16.mxu0 0
        %685 = vmatpush1.bf16.xpose.msra.mxu0 0
        %686 = vmatprep.subr.bf16.mxu0 0
        %687 = vmatpush1.bf16.xpose.msra.mxu0 0
        %688 = vmatprep.subr.bf16.mxu0 0
        %689 = vmatpush1.bf16.xpose.msra.mxu0 0
        %690 = vmatprep.subr.bf16.mxu0 0
        %691 = vmatpush1.bf16.xpose.msra.mxu0 0
        %692 = vmatprep.subr.bf16.mxu0 0
        %693 = vmatpush1.bf16.xpose.msra.mxu0 0
        %694 = vmatprep.subr.bf16.mxu0 0
        %695 = vmatpush1.bf16.xpose.msra.mxu0 0
        %696 = vmatprep.subr.bf16.mxu0 0
        %697 = vmatpush1.bf16.xpose.msra.mxu0 0
        %698 = vmatprep.subr.bf16.mxu0 0
        %699 = vmatpush1.bf16.xpose.msra.mxu0 0
        %700 = vmatprep.subr.bf16.mxu0 0
        %701 = vmatpush1.bf16.xpose.msra.mxu0 0
        %702 = vmatprep.subr.bf16.mxu0 0
        %703 = vmatpush1.bf16.xpose.msra.mxu0 0
        %704 = vmatprep.subr.bf16.mxu0 0
        %705 = vmatpush1.bf16.xpose.msra.mxu0 0
        %706 = vmatprep.subr.bf16.mxu0 0
        %707 = vmatpush1.bf16.xpose.msra.mxu0 0
        %708 = vmatprep.subr.bf16.mxu0 0
        %709 = vmatpush1.bf16.xpose.msra.mxu0 0
        %710 = vmatprep.subr.bf16.mxu0 0
        %711 = vmatpush1.bf16.xpose.msra.mxu0 0
        %712 = vmatprep.mubr.bf16.mxu0 0
        %713 = vmatmul.mubr.bf16.gmra.mrb[0].mxu0 %v675
        %v714 = vpop.f32.mrb[0].mxu0
        %v715 = vadd.f32 %v671, %v714
        %v716 = vpop.f32.mrb[0].mxu0
        %v717 = vpop.f32.mrb[0].mxu0
        %v718 = vpop.f32.mrb[0].mxu0
        %719 = vdwg.mxu0
        %v720 = vsel %vm673, %v715, -inf
        %721 = vmax.xlane.f32.xlu0 %v720
        %v722 = vpop.xlane.xlu0 %721
        %v723 = vsub.f32 %v715, %v722
        %v724 = vmul.f32 %v723, 1.442695
        %v725 = vpow.pop %v724
        %v726 = vsel %vm673, %v725, 0.0
        %727 = vadd.xlane.f32.xlu0 %v726
        %v728 = vpop.xlane.xlu0 %727
        %v729 = vrcp.pop %v728
        %v730 = vpack.c.bf16 %v725, %v725
        %v732 = vsel %vm673, %v730, 0
        %vm734 = vcmask 1043456
        %v736 = vsel %vm734, %v663, 0
        %738 = vmatprep.subr.bf16.mxu0 0
        %739 = vmatpush1.bf16.msra.mxu0 %v736
        %740 = vmatprep.subr.bf16.mxu0 0
        %741 = vmatpush1.bf16.msra.mxu0 0
        %742 = vmatprep.subr.bf16.mxu0 0
        %743 = vmatpush1.bf16.msra.mxu0 0
        %744 = vmatprep.subr.bf16.mxu0 0
        %745 = vmatpush1.bf16.msra.mxu0 0
        %746 = vmatprep.subr.bf16.mxu0 0
        %747 = vmatpush1.bf16.msra.mxu0 0
        %748 = vmatprep.subr.bf16.mxu0 0
        %749 = vmatpush1.bf16.msra.mxu0 0
        %750 = vmatprep.subr.bf16.mxu0 0
        %751 = vmatpush1.bf16.msra.mxu0 0
        %752 = vmatprep.subr.bf16.mxu0 0
        %753 = vmatpush1.bf16.msra.mxu0 0
        %754 = vmatprep.subr.bf16.mxu0 0
        %755 = vmatpush1.bf16.msra.mxu0 0
        %756 = vmatprep.subr.bf16.mxu0 0
        %757 = vmatpush1.bf16.msra.mxu0 0
        %758 = vmatprep.subr.bf16.mxu0 0
        %759 = vmatpush1.bf16.msra.mxu0 0
        %760 = vmatprep.subr.bf16.mxu0 0
        %761 = vmatpush1.bf16.msra.mxu0 0
        %762 = vmatprep.subr.bf16.mxu0 0
        %763 = vmatpush1.bf16.msra.mxu0 0
        %764 = vmatprep.subr.bf16.mxu0 0
        %765 = vmatpush1.bf16.msra.mxu0 0
        %766 = vmatprep.subr.bf16.mxu0 0
        %767 = vmatpush1.bf16.msra.mxu0 0
        %768 = vmatprep.subr.bf16.mxu0 0
        %769 = vmatpush1.bf16.msra.mxu0 0
        %770 = vmatprep.mubr.bf16.mxu0 0
        %771 = vmatmul.mubr.bf16.gmra.mrb[0].mxu0 %v732
        %v772 = vpop.f32.mrb[0].mxu0
        %v773 = vadd.f32 0.0, %v772
        %v774 = vpop.f32.mrb[0].mxu0
        %v775 = vpop.f32.mrb[0].mxu0
        %v776 = vpop.f32.mrb[0].mxu0
        %777 = vdwg.mxu0
        %v778 = vmul.f32 %v773, %v729
        %779 = vst.msk [vmem:[#allocation2] sm:$0xff] %vm673, %v778
        %781 = vrot.lane.b32.xlu0 %v661, 120
        %v782 = vpop.permute.xlu0 %781
        %784 = vrot.lane.b32.xlu0 %v662, 120
        %v785 = vpop.permute.xlu0 %784
        %v787 = vsel %vm673, %v782, 0
        %v790 = vsel %vm673, %v785, 0
        %792 = vmatprep.subr.bf16.mxu0 0
        %793 = vmatpush1.bf16.xpose.msra.mxu0 %v790
        %794 = vmatprep.subr.bf16.mxu0 0
        %795 = vmatpush1.bf16.xpose.msra.mxu0 0
        %796 = vmatprep.subr.bf16.mxu0 0
        %797 = vmatpush1.bf16.xpose.msra.mxu0 0
        %798 = vmatprep.subr.bf16.mxu0 0
        %799 = vmatpush1.bf16.xpose.msra.mxu0 0
        %800 = vmatprep.subr.bf16.mxu0 0
        %801 = vmatpush1.bf16.xpose.msra.mxu0 0
        %802 = vmatprep.subr.bf16.mxu0 0
        %803 = vmatpush1.bf16.xpose.msra.mxu0 0
        %804 = vmatprep.subr.bf16.mxu0 0
        %805 = vmatpush1.bf16.xpose.msra.mxu0 0
        %806 = vmatprep.subr.bf16.mxu0 0
        %807 = vmatpush1.bf16.xpose.msra.mxu0 0
        %808 = vmatprep.subr.bf16.mxu0 0
        %809 = vmatpush1.bf16.xpose.msra.mxu0 0
        %810 = vmatprep.subr.bf16.mxu0 0
        %811 = vmatpush1.bf16.xpose.msra.mxu0 0
        %812 = vmatprep.subr.bf16.mxu0 0
        %813 = vmatpush1.bf16.xpose.msra.mxu0 0
        %814 = vmatprep.subr.bf16.mxu0 0
        %815 = vmatpush1.bf16.xpose.msra.mxu0 0
        %816 = vmatprep.subr.bf16.mxu0 0
        %817 = vmatpush1.bf16.xpose.msra.mxu0 0
        %818 = vmatprep.subr.bf16.mxu0 0
        %819 = vmatpush1.bf16.xpose.msra.mxu0 0
        %820 = vmatprep.subr.bf16.mxu0 0
        %821 = vmatpush1.bf16.xpose.msra.mxu0 0
        %822 = vmatprep.subr.bf16.mxu0 0
        %823 = vmatpush1.bf16.xpose.msra.mxu0 0
        %824 = vmatprep.mubr.bf16.mxu0 0
        %825 = vmatmul.mubr.bf16.gmra.mrb[0].mxu0 %v787
        %v826 = vpop.f32.mrb[0].mxu0
        %v827 = vadd.f32 %v671, %v826
        %v828 = vpop.f32.mrb[0].mxu0
        %v829 = vpop.f32.mrb[0].mxu0
        %v830 = vpop.f32.mrb[0].mxu0
        %831 = vdwg.mxu0
        %v832 = vsel %vm673, %v827, -inf
        %833 = vmax.xlane.f32.xlu0 %v832
        %v834 = vpop.xlane.xlu0 %833
        %v835 = vsub.f32 %v827, %v834
        %v836 = vmul.f32 %v835, 1.442695
        %v837 = vpow.pop %v836
        %v838 = vsel %vm673, %v837, 0.0
        %839 = vadd.xlane.f32.xlu0 %v838
        %v840 = vpop.xlane.xlu0 %839
        %v841 = vrcp.pop %v840
        %v842 = vpack.c.bf16 %v837, %v837
        %844 = vrot.lane.b32.xlu0 %v663, 120
        %v845 = vpop.permute.xlu0 %844
        %v847 = vsel %vm673, %v842, 0
        %v850 = vsel %vm734, %v845, 0
        %852 = vmatprep.subr.bf16.mxu0 0
        %853 = vmatpush1.bf16.msra.mxu0 %v850
        %854 = vmatprep.subr.bf16.mxu0 0
        %855 = vmatpush1.bf16.msra.mxu0 0
        %856 = vmatprep.subr.bf16.mxu0 0
        %857 = vmatpush1.bf16.msra.mxu0 0
        %858 = vmatprep.subr.bf16.mxu0 0
        %859 = vmatpush1.bf16.msra.mxu0 0
        %860 = vmatprep.subr.bf16.mxu0 0
        %861 = vmatpush1.bf16.msra.mxu0 0
        %862 = vmatprep.subr.bf16.mxu0 0
        %863 = vmatpush1.bf16.msra.mxu0 0
        %864 = vmatprep.subr.bf16.mxu0 0
        %865 = vmatpush1.bf16.msra.mxu0 0
        %866 = vmatprep.subr.bf16.mxu0 0
        %867 = vmatpush1.bf16.msra.mxu0 0
        %868 = vmatprep.subr.bf16.mxu0 0
        %869 = vmatpush1.bf16.msra.mxu0 0
        %870 = vmatprep.subr.bf16.mxu0 0
        %871 = vmatpush1.bf16.msra.mxu0 0
        %872 = vmatprep.subr.bf16.mxu0 0
        %873 = vmatpush1.bf16.msra.mxu0 0
        %874 = vmatprep.subr.bf16.mxu0 0
        %875 = vmatpush1.bf16.msra.mxu0 0
        %876 = vmatprep.subr.bf16.mxu0 0
        %877 = vmatpush1.bf16.msra.mxu0 0
        %878 = vmatprep.subr.bf16.mxu0 0
        %879 = vmatpush1.bf16.msra.mxu0 0
        %880 = vmatprep.subr.bf16.mxu0 0
        %881 = vmatpush1.bf16.msra.mxu0 0
        %882 = vmatprep.subr.bf16.mxu0 0
        %883 = vmatpush1.bf16.msra.mxu0 0
        %884 = vmatprep.mubr.bf16.mxu0 0
        %885 = vmatmul.mubr.bf16.gmra.mrb[0].mxu0 %v847
        %v886 = vpop.f32.mrb[0].mxu0
        %v887 = vadd.f32 0.0, %v886
        %v888 = vpop.f32.mrb[0].mxu0
        %v889 = vpop.f32.mrb[0].mxu0
        %v890 = vpop.f32.mrb[0].mxu0
        %891 = vdwg.mxu0
        %v892 = vmul.f32 %v887, %v841
        %894 = vrot.lane.b32.xlu0 %v892, 8
        %v895 = vpop.permute.xlu0 %894
        %vm897 = vcmask 130112
        %898 = vst.msk [vmem:[#allocation2] sm:$0xff] %vm897, %v895
        %899 = vrot.lane.b32.xlu0 %v661, 112
        %v900 = vpop.permute.xlu0 %899
        %901 = vrot.lane.b32.xlu0 %v662, 112
        %v902 = vpop.permute.xlu0 %901
        %v904 = vsel %vm673, %v900, 0
        %v907 = vsel %vm673, %v902, 0
        %909 = vmatprep.subr.bf16.mxu0 0
        %910 = vmatpush1.bf16.xpose.msra.mxu0 %v907
        %911 = vmatprep.subr.bf16.mxu0 0
        %912 = vmatpush1.bf16.xpose.msra.mxu0 0
        %913 = vmatprep.subr.bf16.mxu0 0
        %914 = vmatpush1.bf16.xpose.msra.mxu0 0
        %915 = vmatprep.subr.bf16.mxu0 0
        %916 = vmatpush1.bf16.xpose.msra.mxu0 0
        %917 = vmatprep.subr.bf16.mxu0 0
        %918 = vmatpush1.bf16.xpose.msra.mxu0 0
        %919 = vmatprep.subr.bf16.mxu0 0
        %920 = vmatpush1.bf16.xpose.msra.mxu0 0
        %921 = vmatprep.subr.bf16.mxu0 0
        %922 = vmatpush1.bf16.xpose.msra.mxu0 0
        %923 = vmatprep.subr.bf16.mxu0 0
        %924 = vmatpush1.bf16.xpose.msra.mxu0 0
        %925 = vmatprep.subr.bf16.mxu0 0
        %926 = vmatpush1.bf16.xpose.msra.mxu0 0
        %927 = vmatprep.subr.bf16.mxu0 0
        %928 = vmatpush1.bf16.xpose.msra.mxu0 0
        %929 = vmatprep.subr.bf16.mxu0 0
        %930 = vmatpush1.bf16.xpose.msra.mxu0 0
        %931 = vmatprep.subr.bf16.mxu0 0
        %932 = vmatpush1.bf16.xpose.msra.mxu0 0
        %933 = vmatprep.subr.bf16.mxu0 0
        %934 = vmatpush1.bf16.xpose.msra.mxu0 0
        %935 = vmatprep.subr.bf16.mxu0 0
        %936 = vmatpush1.bf16.xpose.msra.mxu0 0
        %937 = vmatprep.subr.bf16.mxu0 0
        %938 = vmatpush1.bf16.xpose.msra.mxu0 0
        %939 = vmatprep.subr.bf16.mxu0 0
        %940 = vmatpush1.bf16.xpose.msra.mxu0 0
        %941 = vmatprep.mubr.bf16.mxu0 0
        %942 = vmatmul.mubr.bf16.gmra.mrb[0].mxu0 %v904
        %v943 = vpop.f32.mrb[0].mxu0
        %v944 = vadd.f32 %v671, %v943
        %v945 = vpop.f32.mrb[0].mxu0
        %v946 = vpop.f32.mrb[0].mxu0
        %v947 = vpop.f32.mrb[0].mxu0
        %948 = vdwg.mxu0
        %v949 = vsel %vm673, %v944, -inf
        %950 = vmax.xlane.f32.xlu0 %v949
        %v951 = vpop.xlane.xlu0 %950
        %v952 = vsub.f32 %v944, %v951
        %v953 = vmul.f32 %v952, 1.442695
        %v954 = vpow.pop %v953
        %v955 = vsel %vm673, %v954, 0.0
        %956 = vadd.xlane.f32.xlu0 %v955
        %v957 = vpop.xlane.xlu0 %956
        %v958 = vrcp.pop %v957
        %v959 = vpack.c.bf16 %v954, %v954
        %960 = vrot.lane.b32.xlu0 %v663, 112
        %v961 = vpop.permute.xlu0 %960
        %v963 = vsel %vm673, %v959, 0
        %v966 = vsel %vm734, %v961, 0
        %968 = vmatprep.subr.bf16.mxu0 0
        %969 = vmatpush1.bf16.msra.mxu0 %v966
        %970 = vmatprep.subr.bf16.mxu0 0
        %971 = vmatpush1.bf16.msra.mxu0 0
        %972 = vmatprep.subr.bf16.mxu0 0
        %973 = vmatpush1.bf16.msra.mxu0 0
        %974 = vmatprep.subr.bf16.mxu0 0
        %975 = vmatpush1.bf16.msra.mxu0 0
        %976 = vmatprep.subr.bf16.mxu0 0
        %977 = vmatpush1.bf16.msra.mxu0 0
        %978 = vmatprep.subr.bf16.mxu0 0
        %979 = vmatpush1.bf16.msra.mxu0 0
        %980 = vmatprep.subr.bf16.mxu0 0
        %981 = vmatpush1.bf16.msra.mxu0 0
        %982 = vmatprep.subr.bf16.mxu0 0
        %983 = vmatpush1.bf16.msra.mxu0 0
        %984 = vmatprep.subr.bf16.mxu0 0
        %985 = vmatpush1.bf16.msra.mxu0 0
        %986 = vmatprep.subr.bf16.mxu0 0
        %987 = vmatpush1.bf16.msra.mxu0 0
        %988 = vmatprep.subr.bf16.mxu0 0
        %989 = vmatpush1.bf16.msra.mxu0 0
        %990 = vmatprep.subr.bf16.mxu0 0
        %991 = vmatpush1.bf16.msra.mxu0 0
        %992 = vmatprep.subr.bf16.mxu0 0
        %993 = vmatpush1.bf16.msra.mxu0 0
        %994 = vmatprep.subr.bf16.mxu0 0
        %995 = vmatpush1.bf16.msra.mxu0 0
        %996 = vmatprep.subr.bf16.mxu0 0
        %997 = vmatpush1.bf16.msra.mxu0 0
        %998 = vmatprep.subr.bf16.mxu0 0
        %999 = vmatpush1.bf16.msra.mxu0 0
        %1000 = vmatprep.mubr.bf16.mxu0 0
        %1001 = vmatmul.mubr.bf16.gmra.mrb[0].mxu0 %v963
        %v1002 = vpop.f32.mrb[0].mxu0
        %v1003 = vadd.f32 0.0, %v1002
        %v1004 = vpop.f32.mrb[0].mxu0
        %v1005 = vpop.f32.mrb[0].mxu0
        %v1006 = vpop.f32.mrb[0].mxu0
        %1007 = vdwg.mxu0
        %v1008 = vmul.f32 %v1003, %v958
        %1010 = vrot.lane.b32.xlu0 %v1008, 16
        %v1011 = vpop.permute.xlu0 %1010
        %vm1013 = vcmask 195712
        %1014 = vst.msk [vmem:[#allocation2] sm:$0xff] %vm1013, %v1011
        %1015 = vrot.lane.b32.xlu0 %v661, 104
        %v1016 = vpop.permute.xlu0 %1015
        %1017 = vrot.lane.b32.xlu0 %v662, 104
        %v1018 = vpop.permute.xlu0 %1017
        %v1020 = vsel %vm673, %v1016, 0
        %v1023 = vsel %vm673, %v1018, 0
        %1025 = vmatprep.subr.bf16.mxu0 0
        %1026 = vmatpush1.bf16.xpose.msra.mxu0 %v1023
        %1027 = vmatprep.subr.bf16.mxu0 0
        %1028 = vmatpush1.bf16.xpose.msra.mxu0 0
        %1029 = vmatprep.subr.bf16.mxu0 0
        %1030 = vmatpush1.bf16.xpose.msra.mxu0 0
        %1031 = vmatprep.subr.bf16.mxu0 0
        %1032 = vmatpush1.bf16.xpose.msra.mxu0 0
        %1033 = vmatprep.subr.bf16.mxu0 0
        %1034 = vmatpush1.bf16.xpose.msra.mxu0 0
        %1035 = vmatprep.subr.bf16.mxu0 0
        %1036 = vmatpush1.bf16.xpose.msra.mxu0 0
        %1037 = vmatprep.subr.bf16.mxu0 0
        %1038 = vmatpush1.bf16.xpose.msra.mxu0 0
        %1039 = vmatprep.subr.bf16.mxu0 0
        %1040 = vmatpush1.bf16.xpose.msra.mxu0 0
        %1041 = vmatprep.subr.bf16.mxu0 0
        %1042 = vmatpush1.bf16.xpose.msra.mxu0 0
        %1043 = vmatprep.subr.bf16.mxu0 0
        %1044 = vmatpush1.bf16.xpose.msra.mxu0 0
        %1045 = vmatprep.subr.bf16.mxu0 0
        %1046 = vmatpush1.bf16.xpose.msra.mxu0 0
        %1047 = vmatprep.subr.bf16.mxu0 0
        %1048 = vmatpush1.bf16.xpose.msra.mxu0 0
        %1049 = vmatprep.subr.bf16.mxu0 0
        %1050 = vmatpush1.bf16.xpose.msra.mxu0 0
        %1051 = vmatprep.subr.bf16.mxu0 0
        %1052 = vmatpush1.bf16.xpose.msra.mxu0 0
        %1053 = vmatprep.subr.bf16.mxu0 0
        %1054 = vmatpush1.bf16.xpose.msra.mxu0 0
        %1055 = vmatprep.subr.bf16.mxu0 0
        %1056 = vmatpush1.bf16.xpose.msra.mxu0 0
        %1057 = vmatprep.mubr.bf16.mxu0 0
        %1058 = vmatmul.mubr.bf16.gmra.mrb[0].mxu0 %v1020
        %v1059 = vpop.f32.mrb[0].mxu0
        %v1060 = vadd.f32 %v671, %v1059
        %v1061 = vpop.f32.mrb[0].mxu0
        %v1062 = vpop.f32.mrb[0].mxu0
        %v1063 = vpop.f32.mrb[0].mxu0
        %1064 = vdwg.mxu0
        %v1065 = vsel %vm673, %v1060, -inf
        %1066 = vmax.xlane.f32.xlu0 %v1065
        %v1067 = vpop.xlane.xlu0 %1066
        %v1068 = vsub.f32 %v1060, %v1067
        %v1069 = vmul.f32 %v1068, 1.442695
        %v1070 = vpow.pop %v1069
        %v1071 = vsel %vm673, %v1070, 0.0
        %1072 = vadd.xlane.f32.xlu0 %v1071
        %v1073 = vpop.xlane.xlu0 %1072
        %v1074 = vrcp.pop %v1073
        %v1075 = vpack.c.bf16 %v1070, %v1070
        %1076 = vrot.lane.b32.xlu0 %v663, 104
        %v1077 = vpop.permute.xlu0 %1076
        %v1079 = vsel %vm673, %v1075, 0
        %v1082 = vsel %vm734, %v1077, 0
        %1084 = vmatprep.subr.bf16.mxu0 0
        %1085 = vmatpush1.bf16.msra.mxu0 %v1082
        %1086 = vmatprep.subr.bf16.mxu0 0
        %1087 = vmatpush1.bf16.msra.mxu0 0
        %1088 = vmatprep.subr.bf16.mxu0 0
        %1089 = vmatpush1.bf16.msra.mxu0 0
        %1090 = vmatprep.subr.bf16.mxu0 0
        %1091 = vmatpush1.bf16.msra.mxu0 0
        %1092 = vmatprep.subr.bf16.mxu0 0
        %1093 = vmatpush1.bf16.msra.mxu0 0
        %1094 = vmatprep.subr.bf16.mxu0 0
        %1095 = vmatpush1.bf16.msra.mxu0 0
        %1096 = vmatprep.subr.bf16.mxu0 0
        %1097 = vmatpush1.bf16.msra.mxu0 0
        %1098 = vmatprep.subr.bf16.mxu0 0
        %1099 = vmatpush1.bf16.msra.mxu0 0
        %1100 = vmatprep.subr.bf16.mxu0 0
        %1101 = vmatpush1.bf16.msra.mxu0 0
        %1102 = vmatprep.subr.bf16.mxu0 0
        %1103 = vmatpush1.bf16.msra.mxu0 0
        %1104 = vmatprep.subr.bf16.mxu0 0
        %1105 = vmatpush1.bf16.msra.mxu0 0
        %1106 = vmatprep.subr.bf16.mxu0 0
        %1107 = vmatpush1.bf16.msra.mxu0 0
        %1108 = vmatprep.subr.bf16.mxu0 0
        %1109 = vmatpush1.bf16.msra.mxu0 0
        %1110 = vmatprep.subr.bf16.mxu0 0
        %1111 = vmatpush1.bf16.msra.mxu0 0
        %1112 = vmatprep.subr.bf16.mxu0 0
        %1113 = vmatpush1.bf16.msra.mxu0 0
        %1114 = vmatprep.subr.bf16.mxu0 0
        %1115 = vmatpush1.bf16.msra.mxu0 0
        %1116 = vmatprep.mubr.bf16.mxu0 0
        %1117 = vmatmul.mubr.bf16.gmra.mrb[0].mxu0 %v1079
        %v1118 = vpop.f32.mrb[0].mxu0
        %v1119 = vadd.f32 0.0, %v1118
        %v1120 = vpop.f32.mrb[0].mxu0
        %v1121 = vpop.f32.mrb[0].mxu0
        %v1122 = vpop.f32.mrb[0].mxu0
        %1123 = vdwg.mxu0
        %v1124 = vmul.f32 %v1119, %v1074
        %1126 = vrot.lane.b32.xlu0 %v1124, 24
        %v1127 = vpop.permute.xlu0 %1126
        %vm1129 = vcmask 261312
        %1130 = vst.msk [vmem:[#allocation2] sm:$0xff] %vm1129, %v1127
        %v1131 = vld [vmem:[#allocation2] sm:$0xff]
        %v1132 = vpack.c.bf16 %v1131, %v1131
        %v1133 = vld [vmem:[%s10] sm:$0xf]
        %v1134 = vld [vmem:[%s10 + $0x4] sm:$0xf]
        %v1135 = vld [vmem:[%s10 + $0x8] sm:$0xf]
        %v1136 = vld [vmem:[%s10 + $0xc] sm:$0xf]
        %v1137 = vld [vmem:[%s11] sm:$0x1]
        %v1139 = vlaneseq
        %v1140 = vshrl.u32 %v1139, 7
        %v1141 = vsub.s32 0, %v1140
        %v1142 = vrot.slane %v1137, %v1141
        %v1148 = vunpack.c.l.b16 %v1133
        %v1149 = vunpack.c.l.b16 %v1134
        %v1150 = vunpack.c.l.b16 %v1135
        %v1151 = vunpack.c.l.b16 %v1136
        %v1152 = vpack.c.b16 %v1149, %v1148
        %v1153 = vpack.c.b16 %v1151, %v1150
        %v1157 = vsel %vm482, %v1132, 0
        %1159 = vmatprep.subr.bf16.mxu0 0
        %1160 = vmatpush1.bf16.msra.mxu0 %v1152
        %1161 = vmatprep.subr.bf16.mxu0 0
        %1162 = vmatpush1.bf16.msra.mxu0 %v1153
        %1163 = vmatprep.subr.bf16.mxu0 0
        %1164 = vmatpush1.bf16.msra.mxu0 0
        %1165 = vmatprep.subr.bf16.mxu0 0
        %1166 = vmatpush1.bf16.msra.mxu0 0
        %1167 = vmatprep.subr.bf16.mxu0 0
        %1168 = vmatpush1.bf16.msra.mxu0 0
        %1169 = vmatprep.subr.bf16.mxu0 0
        %1170 = vmatpush1.bf16.msra.mxu0 0
        %1171 = vmatprep.subr.bf16.mxu0 0
        %1172 = vmatpush1.bf16.msra.mxu0 0
        %1173 = vmatprep.subr.bf16.mxu0 0
        %1174 = vmatpush1.bf16.msra.mxu0 0
        %1175 = vmatprep.subr.bf16.mxu0 0
        %1176 = vmatpush1.bf16.msra.mxu0 0
        %1177 = vmatprep.subr.bf16.mxu0 0
        %1178 = vmatpush1.bf16.msra.mxu0 0
        %1179 = vmatprep.subr.bf16.mxu0 0
        %1180 = vmatpush1.bf16.msra.mxu0 0
        %1181 = vmatprep.subr.bf16.mxu0 0
        %1182 = vmatpush1.bf16.msra.mxu0 0
        %1183 = vmatprep.subr.bf16.mxu0 0
        %1184 = vmatpush1.bf16.msra.mxu0 0
        %1185 = vmatprep.subr.bf16.mxu0 0
        %1186 = vmatpush1.bf16.msra.mxu0 0
        %1187 = vmatprep.subr.bf16.mxu0 0
        %1188 = vmatpush1.bf16.msra.mxu0 0
        %1189 = vmatprep.subr.bf16.mxu0 0
        %1190 = vmatpush1.bf16.msra.mxu0 0
        %1191 = vmatprep.mubr.bf16.mxu0 0
        %1192 = vmatmul.mubr.bf16.gmra.mrb[0].mxu0 %v1157
        %v1193 = vpop.f32.mrb[0].mxu0
        %v1194 = vadd.f32 %v1142, %v1193
        %v1195 = vpop.f32.mrb[0].mxu0
        %v1196 = vpop.f32.mrb[0].mxu0
        %v1197 = vpop.f32.mrb[0].mxu0
        %1198 = vdwg.mxu0
        %1199 = vst.msk [vmem:[%s441] sm:$0xff] %vm482, %v1194
        %s1200 = sand.u32 %s306, 1
        %s1201 = scalar_lea.sflag [#allocation4], %s1200
        %s1202 = sand.u32 %s306, 1
        %s1203 = smul.addr %s1202, 8
        %s1204 = scalar_lea.vmem [#allocation3], %s1203
        // Predicated region
        $region69: #{multi_headed_attention.1} parent=67 // pred_check
          %p1205 = pneg %p316
        $region70: #{multi_headed_attention.1} parent=67 // pred_check_branch
          %1207 = sbr.rel (%p1205) target = $region72
        $region71: #{multi_headed_attention.1} parent=67 // pred_region
          %s1209 = ssub.s32 128, 128
          %1210 = vsyncadd %s1201, %s1209
          %s1211 = smul.addr %s26, 128
          %s1212 = scalar_lea.hbm %s12, %s1211
          %s1214 = sshll.u32 %s1204, 4
          %s1215 = int_to_ptr.vmem [resolvable:$true] %s1214
          %1217 = dma.vmem_to_hbm [thread:$0]  %s1215, 128, %s1212, %s1201
        $region72: #{multi_headed_attention.1} parent=67 // pred_fallthru
          _
      $region68: #{multi_headed_attention.1} parent=5 // pred_fallthru
        _
      %p1218 = scmp.le.s32.totalorder 2, %s21
      // Predicated region
      $region73: #{multi_headed_attention.1} parent=5 // pred_check
        %p1219 = pneg %p1218
      $region74: #{multi_headed_attention.1} parent=5 // pred_check_branch
        %1221 = sbr.rel (%p1219) target = $region76
      $region75: #{multi_headed_attention.1} parent=5 // pred_region
        %s1222 = ssub.s32 %s21, 2
        // Predicated region
        $region77: #{multi_headed_attention.1} parent=75 // pred_check
          %p1223 = pneg %p322
        $region78: #{multi_headed_attention.1} parent=75 // pred_check_branch
          %1225 = sbr.rel (%p1223) target = $region80
        $region79: #{multi_headed_attention.1} parent=75 // pred_region
          %s1226 = sand.u32 %s307, 1
          %s1227 = scalar_lea.sflag [#allocation4], %s1226
          %s1228 = sand.u32 %s307, 1
          %s1229 = smul.addr %s1228, 8
          %s1230 = scalar_lea.vmem [#allocation3], %s1229
          %1231 = dma.done %s1227, 128
        $region80: #{multi_headed_attention.1} parent=75 // pred_fallthru
          _
      $region76: #{multi_headed_attention.1} parent=5 // pred_fallthru
        _
    $region6: #{multi_headed_attention.1} parent=1 // loop_footer
      %s25 = sadd.s32 1, %s21
    $region7: #{multi_headed_attention.1} parent=1 // loop_footer_branch
      %20 = sbr.rel target = $region3
    $region8: #{multi_headed_attention.1} parent=1 // loop_exit
      _
    %1232 = vsyncpa [#allocation4], 1
    %s1233 = scalar_lea.sflag [#allocation4], 1
    %1234 = vsyncpa %s1233, 1

</llo_original>
